<compile_context>
chip_gen: v5e
topology: v5e:2x2
jax: 0.10.0
libtpu: 0.0.40
codegen_flags: <defaults>
</compile_context>

<pallas_src>
import jax
import jax.numpy as jnp
from jax import lax
from jax.experimental import pallas as pl
from jax.experimental.pallas import tpu as pltpu

IMAGE_EMBED_DIM = 512
CONV_IN_CH = 5
CONV_OUT_CH = 64
KERNEL_SIZE = 3
POOL_OUT = 16
FLAT_DIM = CONV_OUT_CH * POOL_OUT          # 1024 == 2 * IMAGE_EMBED_DIM
BN_EPS = 1e-5


# ----------------------------------------------------------------------------
# Fused kernel: grouped Conv1d(5->64,k=3,pad=1) + AdaptiveMaxPool1d(16)
#               + folded-BN + ReLU + Linear(1024,512) + ReLU + Linear(512,512)
# One grid step processes a batch tile of `bt` rows; weights stay VMEM-resident
# (constant index maps).
# ----------------------------------------------------------------------------
def _fused_kernel(xg_ref, wbd_ref, scale_ref, shift_ref,
                  w1_ref, b1_ref, w2_ref, b2_ref, o_ref):
    bt, n_win, taps = xg_ref.shape                 # n_win = 16, taps = (g+2)*5
    g = wbd_ref.shape[1] // CONV_OUT_CH

    # Grouped Conv1d as one matmul (bf16 operands, f32 accumulation).
    # Row (b, i) of xg holds the g+2 padded x positions feeding pool window i;
    # column block j of the block-diagonal weight holds the conv outputs at
    # window position j.  Reshape only merges leading dims (free: 16 % 8 == 0).
    xg = xg_ref[...].reshape(bt * n_win, taps)
    conv = jnp.dot(xg, wbd_ref[...],
                   preferred_element_type=jnp.float32)     # (bt*16, g*64)

    # AdaptiveMaxPool1d(16): each window's max is the max over the g 64-lane
    # column blocks of its row (pooling folded into the grouped-conv layout).
    pooled = conv[:, :CONV_OUT_CH]
    for j in range(1, g):
        pooled = jnp.maximum(pooled, conv[:, j * CONV_OUT_CH:(j + 1) * CONV_OUT_CH])

    # Flatten to the lane-dense (bt, 1024) activation with flat index i*64 + o
    # (BN vectors / W1 rows were permuted to this order in prepare_params()).
    p3 = pooled.reshape(bt, n_win, CONV_OUT_CH)             # free leading split
    flat = jnp.concatenate([p3[:, i, :] for i in range(n_win)], axis=-1)

    # Folded eval-mode BatchNorm (+conv bias) -> ReLU -> Linear -> ReLU -> Linear.
    h = jnp.maximum(flat * scale_ref[...] + shift_ref[...], 0.0)
    h = jnp.dot(h.astype(jnp.bfloat16), w1_ref[...],
                preferred_element_type=jnp.float32) + b1_ref[...]
    h = jnp.maximum(h, 0.0)
    out = jnp.dot(h.astype(jnp.bfloat16), w2_ref[...],
                  preferred_element_type=jnp.float32) + b2_ref[...]
    o_ref[...] = out.astype(o_ref.dtype)


# ----------------------------------------------------------------------------
# One-time parameter preparation (weight re-layout, bf16 cast, BN folding).
# ----------------------------------------------------------------------------
def _permute_flat(v):
    # torch flat index f = o*16 + i  ->  kernel flat index g = i*64 + o
    return v.reshape(CONV_OUT_CH, POOL_OUT).T.reshape(FLAT_DIM)


def prepare_params(params, seq_len):
    # TODO(synk): only L % 16 == 0 is supported (uniform AdaptiveMaxPool windows).
    assert seq_len % POOL_OUT == 0, "sequence length must be a multiple of 16"
    g = seq_len // POOL_OUT
    taps = (g + 2) * CONV_IN_CH

    # Block-diagonal grouped conv weight: row = (window position p, in ch c),
    # column = (group position j, out ch o); conv at j uses window rows j..j+2.
    wbd = jnp.zeros((taps, g * CONV_OUT_CH), jnp.float32)
    for j in range(g):
        for k in range(KERNEL_SIZE):
            r = (j + k) * CONV_IN_CH
            wbd = wbd.at[r:r + CONV_IN_CH,
                         j * CONV_OUT_CH:(j + 1) * CONV_OUT_CH].set(
                             params["conv_w"][:, :, k].T)

    # TODO(synk): BatchNorm1d is implemented in eval mode (running stats);
    # train-mode batch statistics are not reproduced.
    scale = params["bn_gamma"] * lax.rsqrt(params["bn_var"] + BN_EPS)
    shift = params["bn_beta"] - params["bn_mean"] * scale
    scale_p = _permute_flat(scale)
    # max(conv + bias) == max(conv) + bias, so the conv bias folds into the BN shift.
    shift_p = _permute_flat(shift) + jnp.tile(params["conv_b"], POOL_OUT) * scale_p

    # torch Linear computes x @ W.T; permute W1 rows to the kernel flat order.
    w1t = params["w1"].T                                           # (1024, 512)
    w1p = (w1t.reshape(CONV_OUT_CH, POOL_OUT, IMAGE_EMBED_DIM)
              .transpose(1, 0, 2).reshape(FLAT_DIM, IMAGE_EMBED_DIM))

    return dict(
        g=g,
        wbd=wbd.astype(jnp.bfloat16),
        scale=scale_p.reshape(1, FLAT_DIM),
        shift=shift_p.reshape(1, FLAT_DIM),
        w1=w1p.astype(jnp.bfloat16),
        b1=params["b1"].reshape(1, IMAGE_EMBED_DIM),
        w2=params["w2"].T.astype(jnp.bfloat16),
        b2=params["b2"].reshape(1, IMAGE_EMBED_DIM),
    )


def _pick_batch_tile(B, batch_tile):
    """Rows per grid step: multiple of 8 (or the full batch), capped at
    batch_tile, aiming for >=2 grid steps so v7x megacore can split the batch."""
    if B <= 8:
        return B
    half = -(-B // 2)
    bt = min(batch_tile, half)
    bt = max(8, (bt // 8) * 8)
    return min(bt, B)


# ----------------------------------------------------------------------------
# Forward.  Host side does pure layout plumbing: channel concat, NCL->NLC,
# pad L by 1, grouped im2col into a lane-dense bf16 slab.  Everything else
# (conv matmul, pooling, BN, MLP) runs in the single fused pallas_call.
# ----------------------------------------------------------------------------
def conv_mapping_forward(x_tuple, prep, *, batch_tile=128):
    x_cat = jnp.concatenate(x_tuple[1:], axis=1)        # (B, 5, L), like torch.cat(x[1:], 1)
    B, C, L = x_cat.shape
    assert C == CONV_IN_CH
    g = prep["g"]
    assert L == g * POOL_OUT, "prepare_params() was built for a different sequence length"
    taps = (g + 2) * CONV_IN_CH

    x_nlc = jnp.transpose(x_cat, (0, 2, 1))              # (B, L, 5)
    xpad = jnp.pad(x_nlc, ((0, 0), (1, 1), (0, 0)))      # (B, L+2, 5)
    # Pool window i needs padded positions [i*g, i*g + g + 2).
    wins = [xpad[:, i * g:i * g + g + 2, :].reshape(B, 1, taps) for i in range(POOL_OUT)]
    xg = jnp.concatenate(wins, axis=1).astype(jnp.bfloat16)   # (B, 16, taps), lane-dense

    bt = _pick_batch_tile(B, batch_tile)
    grid = (pl.cdiv(B, bt),)

    flops = 2 * B * (POOL_OUT * taps * g * CONV_OUT_CH
                     + FLAT_DIM * IMAGE_EMBED_DIM
                     + IMAGE_EMBED_DIM * IMAGE_EMBED_DIM)
    bytes_accessed = (2 * (B * POOL_OUT * taps
                           + taps * g * CONV_OUT_CH
                           + FLAT_DIM * IMAGE_EMBED_DIM
                           + IMAGE_EMBED_DIM * IMAGE_EMBED_DIM)
                      + 4 * (2 * FLAT_DIM + 2 * IMAGE_EMBED_DIM + B * IMAGE_EMBED_DIM))

    const2 = lambda b: (0, 0)
    return pl.pallas_call(
        _fused_kernel,
        out_shape=jax.ShapeDtypeStruct((B, IMAGE_EMBED_DIM), jnp.float32),
        grid=grid,
        in_specs=[
            pl.BlockSpec((bt, POOL_OUT, taps), lambda b: (b, 0, 0)),     # im2col tile (bf16)
            pl.BlockSpec((taps, g * CONV_OUT_CH), const2),               # block-diag conv W (bf16)
            pl.BlockSpec((1, FLAT_DIM), const2),                         # BN scale (permuted)
            pl.BlockSpec((1, FLAT_DIM), const2),                         # BN shift (+conv bias)
            pl.BlockSpec((FLAT_DIM, IMAGE_EMBED_DIM), const2),           # W1 (permuted, transposed, bf16)
            pl.BlockSpec((1, IMAGE_EMBED_DIM), const2),                  # b1
            pl.BlockSpec((IMAGE_EMBED_DIM, IMAGE_EMBED_DIM), const2),    # W2.T (bf16)
            pl.BlockSpec((1, IMAGE_EMBED_DIM), const2),                  # b2
        ],
        out_specs=pl.BlockSpec((bt, IMAGE_EMBED_DIM), lambda b: (b, 0)),
        compiler_params=pltpu.CompilerParams(dimension_semantics=("parallel",)),
        cost_estimate=pl.CostEstimate(flops=flops, transcendentals=0,
                                      bytes_accessed=bytes_accessed),
    )(xg, prep["wbd"], prep["scale"], prep["shift"],
      prep["w1"], prep["b1"], prep["w2"], prep["b2"])


# ----------------------------------------------------------------------------
# Plain-JAX reference (mirrors the PyTorch module, eval-mode BN) + params.
# ----------------------------------------------------------------------------
def reference_forward(x_tuple, params):
    x_cat = jnp.concatenate(x_tuple[1:], axis=1)                     # (B, 5, L)
    B, _, L = x_cat.shape
    xp = jnp.pad(x_cat, ((0, 0), (0, 0), (1, 1)))
    w = params["conv_w"]
    conv = sum(jnp.einsum("bcl,oc->bol", xp[:, :, k:k + L], w[:, :, k])
               for k in range(KERNEL_SIZE)) + params["conv_b"][None, :, None]
    pieces = []
    for i in range(POOL_OUT):
        s = (i * L) // POOL_OUT
        e = ((i + 1) * L + POOL_OUT - 1) // POOL_OUT
        pieces.append(jnp.max(conv[:, :, s:e], axis=-1, keepdims=True))
    flat = jnp.concatenate(pieces, axis=-1).reshape(B, FLAT_DIM)
    scale = params["bn_gamma"] * lax.rsqrt(params["bn_var"] + BN_EPS)
    h = (flat - params["bn_mean"]) * scale + params["bn_beta"]
    h = jnp.maximum(h, 0.0)
    h = jnp.maximum(h @ params["w1"].T + params["b1"], 0.0)
    return h @ params["w2"].T + params["b2"]


def init_params(key):
    ks = jax.random.split(key, 6)
    return dict(
        conv_w=jax.random.normal(ks[0], (CONV_OUT_CH, CONV_IN_CH, KERNEL_SIZE), jnp.float32) * 0.1,
        conv_b=jax.random.normal(ks[1], (CONV_OUT_CH,), jnp.float32) * 0.1,
        # torch.nn.Linear stores weight as (out_features, in_features)
        w1=jax.random.normal(ks[2], (IMAGE_EMBED_DIM, FLAT_DIM), jnp.float32) * 0.03,
        b1=jax.random.normal(ks[3], (IMAGE_EMBED_DIM,), jnp.float32) * 0.01,
        w2=jax.random.normal(ks[4], (IMAGE_EMBED_DIM, IMAGE_EMBED_DIM), jnp.float32) * 0.04,
        b2=jax.random.normal(ks[5], (IMAGE_EMBED_DIM,), jnp.float32) * 0.01,
        # PyTorch BatchNorm1d defaults
        bn_gamma=jnp.ones((FLAT_DIM,), jnp.float32),
        bn_beta=jnp.zeros((FLAT_DIM,), jnp.float32),
        bn_mean=jnp.zeros((FLAT_DIM,), jnp.float32),
        bn_var=jnp.ones((FLAT_DIM,), jnp.float32),
    )


if __name__ == "__main__":
    key = jax.random.PRNGKey(0)
    kp, kx0, kx1, kx2 = jax.random.split(key, 4)
    params = init_params(kp)

    B, L = 2, 32
    prep = prepare_params(params, L)

    # x is a tuple; x[0] is unused by forward, x[1:] concatenate to 5 channels.
    x0 = jax.random.normal(kx0, (B, IMAGE_EMBED_DIM), jnp.float32)
    x1 = jax.random.normal(kx1, (B, 3, L), jnp.float32)
    x2 = jax.random.normal(kx2, (B, 2, L), jnp.float32)
    x_tuple = (x0, x1, x2)

    out = jax.block_until_ready(conv_mapping_forward(x_tuple, prep))
    assert out.shape == (B, IMAGE_EMBED_DIM) and out.dtype == jnp.float32

    ref = jax.block_until_ready(reference_forward(x_tuple, params))
    assert jnp.allclose(out, ref, atol=2e-2, rtol=2e-2), float(jnp.max(jnp.abs(out - ref)))
    print("KERNEL_OK")
</pallas_src>

<mosaic_0001>
module attributes {stable_mosaic.version = 11 : i64} {
  func.func @_fused_kernel(%arg0: i32, %arg1: memref<2x16x20xbf16, #tpu.memory_space<vmem>>, %arg2: memref<20x128xbf16, #tpu.memory_space<vmem>>, %arg3: memref<1x1024xf32, #tpu.memory_space<vmem>>, %arg4: memref<1x1024xf32, #tpu.memory_space<vmem>>, %arg5: memref<1024x512xbf16, #tpu.memory_space<vmem>>, %arg6: memref<1x512xf32, #tpu.memory_space<vmem>>, %arg7: memref<512x512xbf16, #tpu.memory_space<vmem>>, %arg8: memref<1x512xf32, #tpu.memory_space<vmem>>, %arg9: memref<2x512xf32, #tpu.memory_space<vmem>>) attributes {dimension_semantics = [#tpu.dimension_semantics<parallel>], iteration_bounds = array<i64: 1>, scalar_prefetch = 0 : i64, scratch_operands = 0 : i64, tpu.core_type = #tpu.core_type<tc>, window_params = [{transform_indices = @transform_0, window_bounds = array<i64: 2, 16, 20>}, {pipeline_mode = #tpu.pipeline_mode<synchronous>, transform_indices = @transform_1, window_bounds = array<i64: 20, 128>}, {pipeline_mode = #tpu.pipeline_mode<synchronous>, transform_indices = @transform_2, window_bounds = array<i64: 1, 1024>}, {pipeline_mode = #tpu.pipeline_mode<synchronous>, transform_indices = @transform_3, window_bounds = array<i64: 1, 1024>}, {pipeline_mode = #tpu.pipeline_mode<synchronous>, transform_indices = @transform_4, window_bounds = array<i64: 1024, 512>}, {pipeline_mode = #tpu.pipeline_mode<synchronous>, transform_indices = @transform_5, window_bounds = array<i64: 1, 512>}, {pipeline_mode = #tpu.pipeline_mode<synchronous>, transform_indices = @transform_6, window_bounds = array<i64: 512, 512>}, {pipeline_mode = #tpu.pipeline_mode<synchronous>, transform_indices = @transform_7, window_bounds = array<i64: 1, 512>}, {transform_indices = @transform_8, window_bounds = array<i64: 2, 512>}]} {
    %c0 = arith.constant 0 : index
    %c0_0 = arith.constant 0 : index
    %c0_1 = arith.constant 0 : index
    %0 = vector.load %arg1[%c0, %c0_0, %c0_1] : memref<2x16x20xbf16, #tpu.memory_space<vmem>>, vector<2x16x20xbf16>
    %1 = vector.shape_cast %0 : vector<2x16x20xbf16> to vector<32x20xbf16>
    %c0_2 = arith.constant 0 : index
    %c0_3 = arith.constant 0 : index
    %2 = vector.load %arg2[%c0_2, %c0_3] : memref<20x128xbf16, #tpu.memory_space<vmem>>, vector<20x128xbf16>
    %cst = arith.constant dense<0.000000e+00> : vector<32x128xf32>
    %3 = tpu.matmul %1, %2, %cst {dimension_numbers = #tpu.dot_dimension_numbers<[1], [0], [0], [1], [0, 0, 1, 1], [], []>} : vector<32x20xbf16>, vector<20x128xbf16>, vector<32x128xf32> -> vector<32x128xf32>
    %4 = vector.extract_strided_slice %3 {offsets = [0, 0], sizes = [32, 64], strides = [1, 1]} : vector<32x128xf32> to vector<32x64xf32>
    %5 = vector.extract_strided_slice %3 {offsets = [0, 64], sizes = [32, 64], strides = [1, 1]} : vector<32x128xf32> to vector<32x64xf32>
    %6 = arith.maximumf %4, %5 : vector<32x64xf32>
    %7 = vector.shape_cast %6 : vector<32x64xf32> to vector<2x16x64xf32>
    %8 = vector.extract_strided_slice %7 {offsets = [0, 0, 0], sizes = [2, 1, 64], strides = [1, 1, 1]} : vector<2x16x64xf32> to vector<2x1x64xf32>
    %9 = vector.shape_cast %8 : vector<2x1x64xf32> to vector<2x64xf32>
    %10 = vector.extract_strided_slice %7 {offsets = [0, 1, 0], sizes = [2, 1, 64], strides = [1, 1, 1]} : vector<2x16x64xf32> to vector<2x1x64xf32>
    %11 = vector.shape_cast %10 : vector<2x1x64xf32> to vector<2x64xf32>
    %12 = vector.extract_strided_slice %7 {offsets = [0, 2, 0], sizes = [2, 1, 64], strides = [1, 1, 1]} : vector<2x16x64xf32> to vector<2x1x64xf32>
    %13 = vector.shape_cast %12 : vector<2x1x64xf32> to vector<2x64xf32>
    %14 = vector.extract_strided_slice %7 {offsets = [0, 3, 0], sizes = [2, 1, 64], strides = [1, 1, 1]} : vector<2x16x64xf32> to vector<2x1x64xf32>
    %15 = vector.shape_cast %14 : vector<2x1x64xf32> to vector<2x64xf32>
    %16 = vector.extract_strided_slice %7 {offsets = [0, 4, 0], sizes = [2, 1, 64], strides = [1, 1, 1]} : vector<2x16x64xf32> to vector<2x1x64xf32>
    %17 = vector.shape_cast %16 : vector<2x1x64xf32> to vector<2x64xf32>
    %18 = vector.extract_strided_slice %7 {offsets = [0, 5, 0], sizes = [2, 1, 64], strides = [1, 1, 1]} : vector<2x16x64xf32> to vector<2x1x64xf32>
    %19 = vector.shape_cast %18 : vector<2x1x64xf32> to vector<2x64xf32>
    %20 = vector.extract_strided_slice %7 {offsets = [0, 6, 0], sizes = [2, 1, 64], strides = [1, 1, 1]} : vector<2x16x64xf32> to vector<2x1x64xf32>
    %21 = vector.shape_cast %20 : vector<2x1x64xf32> to vector<2x64xf32>
    %22 = vector.extract_strided_slice %7 {offsets = [0, 7, 0], sizes = [2, 1, 64], strides = [1, 1, 1]} : vector<2x16x64xf32> to vector<2x1x64xf32>
    %23 = vector.shape_cast %22 : vector<2x1x64xf32> to vector<2x64xf32>
    %24 = vector.extract_strided_slice %7 {offsets = [0, 8, 0], sizes = [2, 1, 64], strides = [1, 1, 1]} : vector<2x16x64xf32> to vector<2x1x64xf32>
    %25 = vector.shape_cast %24 : vector<2x1x64xf32> to vector<2x64xf32>
    %26 = vector.extract_strided_slice %7 {offsets = [0, 9, 0], sizes = [2, 1, 64], strides = [1, 1, 1]} : vector<2x16x64xf32> to vector<2x1x64xf32>
    %27 = vector.shape_cast %26 : vector<2x1x64xf32> to vector<2x64xf32>
    %28 = vector.extract_strided_slice %7 {offsets = [0, 10, 0], sizes = [2, 1, 64], strides = [1, 1, 1]} : vector<2x16x64xf32> to vector<2x1x64xf32>
    %29 = vector.shape_cast %28 : vector<2x1x64xf32> to vector<2x64xf32>
    %30 = vector.extract_strided_slice %7 {offsets = [0, 11, 0], sizes = [2, 1, 64], strides = [1, 1, 1]} : vector<2x16x64xf32> to vector<2x1x64xf32>
    %31 = vector.shape_cast %30 : vector<2x1x64xf32> to vector<2x64xf32>
    %32 = vector.extract_strided_slice %7 {offsets = [0, 12, 0], sizes = [2, 1, 64], strides = [1, 1, 1]} : vector<2x16x64xf32> to vector<2x1x64xf32>
    %33 = vector.shape_cast %32 : vector<2x1x64xf32> to vector<2x64xf32>
    %34 = vector.extract_strided_slice %7 {offsets = [0, 13, 0], sizes = [2, 1, 64], strides = [1, 1, 1]} : vector<2x16x64xf32> to vector<2x1x64xf32>
    %35 = vector.shape_cast %34 : vector<2x1x64xf32> to vector<2x64xf32>
    %36 = vector.extract_strided_slice %7 {offsets = [0, 14, 0], sizes = [2, 1, 64], strides = [1, 1, 1]} : vector<2x16x64xf32> to vector<2x1x64xf32>
    %37 = vector.shape_cast %36 : vector<2x1x64xf32> to vector<2x64xf32>
    %38 = vector.extract_strided_slice %7 {offsets = [0, 15, 0], sizes = [2, 1, 64], strides = [1, 1, 1]} : vector<2x16x64xf32> to vector<2x1x64xf32>
    %39 = vector.shape_cast %38 : vector<2x1x64xf32> to vector<2x64xf32>
    %40 = tpu.concatenate %9, %11, %13, %15, %17, %19, %21, %23, %25, %27, %29, %31, %33, %35, %37, %39 in 1 : vector<2x64xf32>, vector<2x64xf32>, vector<2x64xf32>, vector<2x64xf32>, vector<2x64xf32>, vector<2x64xf32>, vector<2x64xf32>, vector<2x64xf32>, vector<2x64xf32>, vector<2x64xf32>, vector<2x64xf32>, vector<2x64xf32>, vector<2x64xf32>, vector<2x64xf32>, vector<2x64xf32>, vector<2x64xf32> -> vector<2x1024xf32>
    %c0_4 = arith.constant 0 : index
    %c0_5 = arith.constant 0 : index
    %41 = vector.load %arg3[%c0_4, %c0_5] : memref<1x1024xf32, #tpu.memory_space<vmem>>, vector<1x1024xf32>
    %42 = vector.broadcast %41 : vector<1x1024xf32> to vector<2x1024xf32>
    %43 = arith.mulf %40, %42 : vector<2x1024xf32>
    %c0_6 = arith.constant 0 : index
    %c0_7 = arith.constant 0 : index
    %44 = vector.load %arg4[%c0_6, %c0_7] : memref<1x1024xf32, #tpu.memory_space<vmem>>, vector<1x1024xf32>
    %45 = vector.broadcast %44 : vector<1x1024xf32> to vector<2x1024xf32>
    %46 = arith.addf %43, %45 : vector<2x1024xf32>
    %cst_8 = arith.constant 0.000000e+00 : f32
    %47 = vector.broadcast %cst_8 : f32 to vector<2x1024xf32>
    %48 = arith.maximumf %46, %47 : vector<2x1024xf32>
    %49 = arith.truncf %48 : vector<2x1024xf32> to vector<2x1024xbf16>
    %c0_9 = arith.constant 0 : index
    %c0_10 = arith.constant 0 : index
    %50 = vector.load %arg5[%c0_9, %c0_10] : memref<1024x512xbf16, #tpu.memory_space<vmem>>, vector<1024x512xbf16>
    %cst_11 = arith.constant dense<0.000000e+00> : vector<2x512xf32>
    %51 = tpu.matmul %49, %50, %cst_11 {dimension_numbers = #tpu.dot_dimension_numbers<[1], [0], [0], [1], [0, 0, 1, 1], [], []>} : vector<2x1024xbf16>, vector<1024x512xbf16>, vector<2x512xf32> -> vector<2x512xf32>
    %c0_12 = arith.constant 0 : index
    %c0_13 = arith.constant 0 : index
    %52 = vector.load %arg6[%c0_12, %c0_13] : memref<1x512xf32, #tpu.memory_space<vmem>>, vector<1x512xf32>
    %53 = vector.broadcast %52 : vector<1x512xf32> to vector<2x512xf32>
    %54 = arith.addf %51, %53 : vector<2x512xf32>
    %cst_14 = arith.constant 0.000000e+00 : f32
    %55 = vector.broadcast %cst_14 : f32 to vector<2x512xf32>
    %56 = arith.maximumf %54, %55 : vector<2x512xf32>
    %57 = arith.truncf %56 : vector<2x512xf32> to vector<2x512xbf16>
    %c0_15 = arith.constant 0 : index
    %c0_16 = arith.constant 0 : index
    %58 = vector.load %arg7[%c0_15, %c0_16] : memref<512x512xbf16, #tpu.memory_space<vmem>>, vector<512x512xbf16>
    %cst_17 = arith.constant dense<0.000000e+00> : vector<2x512xf32>
    %59 = tpu.matmul %57, %58, %cst_17 {dimension_numbers = #tpu.dot_dimension_numbers<[1], [0], [0], [1], [0, 0, 1, 1], [], []>} : vector<2x512xbf16>, vector<512x512xbf16>, vector<2x512xf32> -> vector<2x512xf32>
    %c0_18 = arith.constant 0 : index
    %c0_19 = arith.constant 0 : index
    %60 = vector.load %arg8[%c0_18, %c0_19] : memref<1x512xf32, #tpu.memory_space<vmem>>, vector<1x512xf32>
    %61 = vector.broadcast %60 : vector<1x512xf32> to vector<2x512xf32>
    %62 = arith.addf %59, %61 : vector<2x512xf32>
    %c0_20 = arith.constant 0 : index
    %c0_21 = arith.constant 0 : index
    %63 = vector.load %arg9[%c0_20, %c0_21] : memref<2x512xf32, #tpu.memory_space<vmem>>, vector<2x512xf32>
    tpu.vector_store %arg9[%c0_20, %c0_21], %62 {strides = array<i32>} : memref<2x512xf32, #tpu.memory_space<vmem>>, vector<2x512xf32>,
    return
  }
  func.func @transform_0(%arg0: i32) -> (i32, i32, i32) {
    %c0_i32 = arith.constant 0 : i32
    %c0_i32_0 = arith.constant 0 : i32
    %c0_i32_1 = arith.constant 0 : i32
    return %arg0, %c0_i32, %c0_i32_0 : i32, i32, i32
  }
  func.func @transform_1(%arg0: i32) -> (i32, i32) {
    %c0_i32 = arith.constant 0 : i32
    %c0_i32_0 = arith.constant 0 : i32
    %c0_i32_1 = arith.constant 0 : i32
    return %c0_i32, %c0_i32_0 : i32, i32
  }
  func.func @transform_2(%arg0: i32) -> (i32, i32) {
    %c0_i32 = arith.constant 0 : i32
    %c0_i32_0 = arith.constant 0 : i32
    %c0_i32_1 = arith.constant 0 : i32
    return %c0_i32, %c0_i32_0 : i32, i32
  }
  func.func @transform_3(%arg0: i32) -> (i32, i32) {
    %c0_i32 = arith.constant 0 : i32
    %c0_i32_0 = arith.constant 0 : i32
    %c0_i32_1 = arith.constant 0 : i32
    return %c0_i32, %c0_i32_0 : i32, i32
  }
  func.func @transform_4(%arg0: i32) -> (i32, i32) {
    %c0_i32 = arith.constant 0 : i32
    %c0_i32_0 = arith.constant 0 : i32
    %c0_i32_1 = arith.constant 0 : i32
    return %c0_i32, %c0_i32_0 : i32, i32
  }
  func.func @transform_5(%arg0: i32) -> (i32, i32) {
    %c0_i32 = arith.constant 0 : i32
    %c0_i32_0 = arith.constant 0 : i32
    %c0_i32_1 = arith.constant 0 : i32
    return %c0_i32, %c0_i32_0 : i32, i32
  }
  func.func @transform_6(%arg0: i32) -> (i32, i32) {
    %c0_i32 = arith.constant 0 : i32
    %c0_i32_0 = arith.constant 0 : i32
    %c0_i32_1 = arith.constant 0 : i32
    return %c0_i32, %c0_i32_0 : i32, i32
  }
  func.func @transform_7(%arg0: i32) -> (i32, i32) {
    %c0_i32 = arith.constant 0 : i32
    %c0_i32_0 = arith.constant 0 : i32
    %c0_i32_1 = arith.constant 0 : i32
    return %c0_i32, %c0_i32_0 : i32, i32
  }
  func.func @transform_8(%arg0: i32) -> (i32, i32) {
    %c0_i32 = arith.constant 0 : i32
    %c0_i32_0 = arith.constant 0 : i32
    return %arg0, %c0_i32 : i32, i32
  }
}

</mosaic_0001>

<llo_original>
// kernel: tpu_custom_call.1
$region0: #{tpu_custom_call.1}
  #allocation0 [shape = 'u32[]', space=smem, size = 0x4, offset = 0x4, fixed_abs, tag = 'smem constant byte address 0x4 - core index']
  #allocation1 [shape = 'u32[72,128]{1,0:T(1,128)}', space=vmem, size = 0x9000, scoped, tag = 'internal scratch']
  %s0 = inlined_call_operand.hbm [shape: bf16[2,16,20], index: 0, kind: input, shape index: {}]
  %s1 = inlined_call_operand.hbm [shape: bf16[20,128], index: 1, kind: input, shape index: {}]
  %s2 = inlined_call_operand.hbm [shape: f32[1,1024], index: 2, kind: input, shape index: {}]
  %s3 = inlined_call_operand.hbm [shape: f32[1,1024], index: 3, kind: input, shape index: {}]
  %s4 = inlined_call_operand.hbm [shape: bf16[1024,512], index: 4, kind: input, shape index: {}]
  %s5 = inlined_call_operand.vmem [shape: f32[1,512], index: 5, kind: input, shape index: {}]
  %s6 = inlined_call_operand.hbm [shape: bf16[512,512], index: 6, kind: input, shape index: {}]
  %s7 = inlined_call_operand.hbm [shape: f32[1,512], index: 7, kind: input, shape index: {}]
  %s8 = inlined_call_operand.hbm [shape: f32[2,512], index: 8, kind: output, shape index: {}]
  %s9 = sld [smem:[#allocation0]]
  $region70: #{tpu_custom_call.1} parent=0
    _
  %s11 = ssub.s32 1, %s9
  %s12 = scalar_select 0, %s11, %s9
  $region1: #{tpu_custom_call.1} parent=0
    #allocation2 [shape = 'u8[8192]{0}', space=vmem, size = 0x2000, scoped, tag = 'input window, operand 0, single buffered']
    #allocation3 [shape = 's32[1]{0}', space=sflag, size = 0x4, scoped, tag = 'scoped memory for tpu_custom_call.1']
    #allocation4 [shape = 's32[1]{0}', space=sflag, size = 0x4, scoped, tag = 'scoped memory for tpu_custom_call.1']
    #allocation5 [shape = 'u8[6144]{0}', space=vmem, size = 0x1800, scoped, tag = 'input window, operand 1, single buffered']
    #allocation6 [shape = 's32[1]{0}', space=sflag, size = 0x4, scoped, tag = 'scoped memory for tpu_custom_call.1']
    #allocation7 [shape = 'u8[4096]{0}', space=vmem, size = 0x1000, scoped, tag = 'input window, operand 2, single buffered']
    #allocation8 [shape = 'u8[4096]{0}', space=vmem, size = 0x1000, scoped, tag = 'input window, operand 3, single buffered']
    #allocation9 [shape = 's32[1]{0}', space=sflag, size = 0x4, scoped, tag = 'scoped memory for tpu_custom_call.1']
    #allocation10 [shape = 'u8[1048576]{0}', space=vmem, size = 0x100000, scoped, tag = 'input window, operand 4, single buffered']
    #allocation11 [shape = 'u8[524288]{0}', space=vmem, size = 0x80000, scoped, tag = 'input window, operand 6, single buffered']
    #allocation12 [shape = 's32[1]{0}', space=sflag, size = 0x4, scoped, tag = 'scoped memory for tpu_custom_call.1']
    #allocation13 [shape = 'u8[2048]{0}', space=vmem, size = 0x800, scoped, tag = 'input window, operand 7, single buffered']
    #allocation14 [shape = 'u8[4096]{0}', space=vmem, size = 0x1000, scoped, tag = 'output window, operand 0, single buffered']
    %13 = vsyncpa [#allocation3], 0
    %14 = vsyncpa [#allocation6], 0
    %15 = vsyncpa [#allocation9], 0
    %16 = vsyncpa [#allocation12], 0
    %17 = vsyncpa [#allocation4], 0
    // Predicated region
    $region2: #{tpu_custom_call.1} parent=1 // pred_check
      _
    $region3: #{tpu_custom_call.1} parent=1 // pred_check_branch
      %19 = sbr.rel (0) target = $region5
    $region4: #{tpu_custom_call.1} parent=1 // pred_region
      %21 = vsyncadd [#allocation3], 0
      %s22 = sshll.u32 %s0, 4
      %s23 = int_to_ptr.hbm [resolvable:$true] %s22
      %s24 = sshll.u32 [#allocation2], 4
      %s25 = int_to_ptr.vmem [resolvable:$true] %s24
      %30 = dma.hbm_to_vmem [thread:$0]  %s23, 256, %s25, [#allocation3], 64, 64, 4
    $region5: #{tpu_custom_call.1} parent=1 // pred_fallthru
      _
    // Predicated region
    $region6: #{tpu_custom_call.1} parent=1 // pred_check
      _
    $region7: #{tpu_custom_call.1} parent=1 // pred_check_branch
      %32 = sbr.rel (0) target = $region9
    $region8: #{tpu_custom_call.1} parent=1 // pred_region
      %34 = vsyncadd [#allocation6], 0
      %s35 = sshll.u32 %s1, 4
      %s36 = int_to_ptr.hbm [resolvable:$true] %s35
      %s37 = sshll.u32 [#allocation5], 4
      %s38 = int_to_ptr.vmem [resolvable:$true] %s37
      %43 = dma.hbm_to_vmem [thread:$0]  %s36, 192, %s38, [#allocation6], 64, 64, 4
    $region9: #{tpu_custom_call.1} parent=1 // pred_fallthru
      _
    // Predicated region
    $region10: #{tpu_custom_call.1} parent=1 // pred_check
      _
    $region11: #{tpu_custom_call.1} parent=1 // pred_check_branch
      %45 = sbr.rel (0) target = $region13
    $region12: #{tpu_custom_call.1} parent=1 // pred_region
      %47 = vsyncadd [#allocation6], 0
      %s49 = sshll.u32 %s2, 4
      %s50 = int_to_ptr.hbm [resolvable:$true] %s49
      %s51 = sshll.u32 [#allocation7], 4
      %s52 = int_to_ptr.vmem [resolvable:$true] %s51
      %54 = dma.hbm_to_vmem [thread:$0]  %s50, 128, %s52, [#allocation6]
    $region13: #{tpu_custom_call.1} parent=1 // pred_fallthru
      _
    // Predicated region
    $region14: #{tpu_custom_call.1} parent=1 // pred_check
      _
    $region15: #{tpu_custom_call.1} parent=1 // pred_check_branch
      %56 = sbr.rel (0) target = $region17
    $region16: #{tpu_custom_call.1} parent=1 // pred_region
      %58 = vsyncadd [#allocation9], 0
      %s60 = sshll.u32 %s3, 4
      %s61 = int_to_ptr.hbm [resolvable:$true] %s60
      %s62 = sshll.u32 [#allocation8], 4
      %s63 = int_to_ptr.vmem [resolvable:$true] %s62
      %65 = dma.hbm_to_vmem [thread:$0]  %s61, 128, %s63, [#allocation9]
    $region17: #{tpu_custom_call.1} parent=1 // pred_fallthru
      _
    // Predicated region
    $region18: #{tpu_custom_call.1} parent=1 // pred_check
      _
    $region19: #{tpu_custom_call.1} parent=1 // pred_check_branch
      %67 = sbr.rel (0) target = $region21
    $region20: #{tpu_custom_call.1} parent=1 // pred_region
      %69 = vsyncadd [#allocation9], 0
      %s70 = sshll.u32 %s4, 4
      %s71 = int_to_ptr.hbm [resolvable:$true] %s70
      %s72 = sshll.u32 [#allocation10], 4
      %s73 = int_to_ptr.vmem [resolvable:$true] %s72
      %78 = dma.hbm_to_vmem [thread:$0]  %s71, 32768, %s73, [#allocation9], 256, 256, 16
    $region21: #{tpu_custom_call.1} parent=1 // pred_fallthru
      _
    // Predicated region
    $region22: #{tpu_custom_call.1} parent=1 // pred_check
      _
    $region23: #{tpu_custom_call.1} parent=1 // pred_check_branch
      %80 = sbr.rel (0) target = $region25
    $region24: #{tpu_custom_call.1} parent=1 // pred_region
      _
    $region25: #{tpu_custom_call.1} parent=1 // pred_fallthru
      _
    // Predicated region
    $region26: #{tpu_custom_call.1} parent=1 // pred_check
      _
    $region27: #{tpu_custom_call.1} parent=1 // pred_check_branch
      %82 = sbr.rel (0) target = $region29
    $region28: #{tpu_custom_call.1} parent=1 // pred_region
      %84 = vsyncadd [#allocation12], 0
      %s85 = sshll.u32 %s6, 4
      %s86 = int_to_ptr.hbm [resolvable:$true] %s85
      %s87 = sshll.u32 [#allocation11], 4
      %s88 = int_to_ptr.vmem [resolvable:$true] %s87
      %93 = dma.hbm_to_vmem [thread:$0]  %s86, 16384, %s88, [#allocation12], 256, 256, 16
    $region29: #{tpu_custom_call.1} parent=1 // pred_fallthru
      _
    // Predicated region
    $region30: #{tpu_custom_call.1} parent=1 // pred_check
      _
    $region31: #{tpu_custom_call.1} parent=1 // pred_check_branch
      %95 = sbr.rel (0) target = $region33
    $region32: #{tpu_custom_call.1} parent=1 // pred_region
      %97 = vsyncadd [#allocation12], 0
      %s99 = sshll.u32 %s7, 4
      %s100 = int_to_ptr.hbm [resolvable:$true] %s99
      %s101 = sshll.u32 [#allocation13], 4
      %s102 = int_to_ptr.vmem [resolvable:$true] %s101
      %104 = dma.hbm_to_vmem [thread:$0]  %s100, 64, %s102, [#allocation12]
    $region33: #{tpu_custom_call.1} parent=1 // pred_fallthru
      _
    // Predicated region
    $region34: #{tpu_custom_call.1} parent=1 // pred_check
      _
    $region35: #{tpu_custom_call.1} parent=1 // pred_check_branch
      %106 = sbr.rel (0) target = $region37
    $region36: #{tpu_custom_call.1} parent=1 // pred_region
      %108 = dma.done [#allocation3], 256
    $region37: #{tpu_custom_call.1} parent=1 // pred_fallthru
      _
    // Predicated region
    $region38: #{tpu_custom_call.1} parent=1 // pred_check
      _
    $region39: #{tpu_custom_call.1} parent=1 // pred_check_branch
      %110 = sbr.rel (0) target = $region41
    $region40: #{tpu_custom_call.1} parent=1 // pred_region
      %112 = dma.done [#allocation6], 192
    $region41: #{tpu_custom_call.1} parent=1 // pred_fallthru
      _
    // Predicated region
    $region42: #{tpu_custom_call.1} parent=1 // pred_check
      _
    $region43: #{tpu_custom_call.1} parent=1 // pred_check_branch
      %114 = sbr.rel (0) target = $region45
    $region44: #{tpu_custom_call.1} parent=1 // pred_region
      %116 = dma.done [#allocation6], 128
    $region45: #{tpu_custom_call.1} parent=1 // pred_fallthru
      _
    // Predicated region
    $region46: #{tpu_custom_call.1} parent=1 // pred_check
      _
    $region47: #{tpu_custom_call.1} parent=1 // pred_check_branch
      %118 = sbr.rel (0) target = $region49
    $region48: #{tpu_custom_call.1} parent=1 // pred_region
      %120 = dma.done [#allocation9], 128
    $region49: #{tpu_custom_call.1} parent=1 // pred_fallthru
      _
    // Predicated region
    $region50: #{tpu_custom_call.1} parent=1 // pred_check
      _
    $region51: #{tpu_custom_call.1} parent=1 // pred_check_branch
      %122 = sbr.rel (0) target = $region53
    $region52: #{tpu_custom_call.1} parent=1 // pred_region
      %124 = dma.done [#allocation9], 32768
    $region53: #{tpu_custom_call.1} parent=1 // pred_fallthru
      _
    // Predicated region
    $region54: #{tpu_custom_call.1} parent=1 // pred_check
      _
    $region55: #{tpu_custom_call.1} parent=1 // pred_check_branch
      %126 = sbr.rel (0) target = $region57
    $region56: #{tpu_custom_call.1} parent=1 // pred_region
      %128 = dma.done [#allocation12], 16384
    $region57: #{tpu_custom_call.1} parent=1 // pred_fallthru
      _
    // Predicated region
    $region58: #{tpu_custom_call.1} parent=1 // pred_check
      _
    $region59: #{tpu_custom_call.1} parent=1 // pred_check_branch
      %130 = sbr.rel (0) target = $region61
    $region60: #{tpu_custom_call.1} parent=1 // pred_region
      %132 = dma.done [#allocation12], 64
    $region61: #{tpu_custom_call.1} parent=1 // pred_fallthru
      _
    %v134 = vld [vmem:[#allocation2] sm:$0xf]
    %v135 = vld [vmem:[#allocation2 + $0x4] sm:$0xf]
    %v136 = vld [vmem:[#allocation2 + $0x8] sm:$0xf]
    %v137 = vld [vmem:[#allocation2 + $0xc] sm:$0xf]
    %v138 = vld [vmem:[#allocation5] sm:$0xf]
    %v139 = vld [vmem:[#allocation5 + $0x4] sm:$0xf]
    %v140 = vld [vmem:[#allocation5 + $0x8] sm:$0x3]
    %v145 = vunpack.c.l.b16 %v134
    %v146 = vunpack.c.l.b16 %v135
    %v147 = vunpack.c.l.b16 %v136
    %v148 = vunpack.c.l.b16 %v137
    %v149 = vpack.c.b16 %v146, %v145
    %v150 = vpack.c.b16 %v148, %v147
    %v154 = vunpack.c.l.b16 %v138
    %v155 = vunpack.c.l.b16 %v139
    %v156 = vunpack.c.l.b16 %v140
    %v157 = vpack.c.b16 %v155, %v154
    %v158 = vpack.c.b16 %v156, %v156
    %vm160 = vcmask 162816
    %v162 = vsel %vm160, %v149, 0
    %v165 = vsel %vm160, %v150, 0
    %vm167 = vcmask 1041408
    %v169 = vsel %vm167, %v158, 0
    %171 = vmatpush.bf16.msra.mxu0 0
    %172 = vmatpush.bf16.msra.mxu0 0
    %173 = vmatpush.bf16.msra.mxu0 0
    %174 = vmatpush.bf16.msra.mxu0 0
    %175 = vmatpush.bf16.msra.mxu0 0
    %176 = vmatpush.bf16.msra.mxu0 0
    %177 = vmatpush.bf16.msra.mxu0 %v169
    %178 = vmatpush.bf16.msra.mxu0 %v157
    %179 = vmatmul.bf16.gmra.mxu0 %v162
    %v180 = vpop.f32.mrf.mxu0
    %v181 = vadd.f32 0.0, %v180
    %v182 = vpop.f32.mrf.mxu0
    %v183 = vadd.f32 0.0, %v182
    %184 = vmatmul.bf16.gmra.mxu0 %v165
    %v185 = vpop.f32.mrf.mxu0
    %v186 = vadd.f32 0.0, %v185
    %v187 = vpop.f32.mrf.mxu0
    %v188 = vadd.f32 0.0, %v187
    %189 = vdwg.mxu0
    %194 = vrot.lane.b32.xlu0 %v181, 64
    %v195 = vpop.permute.xlu0 %194
    %196 = vrot.lane.b32.xlu0 %v183, 64
    %v197 = vpop.permute.xlu0 %196
    %198 = vrot.lane.b32.xlu0 %v186, 64
    %v199 = vpop.permute.xlu0 %198
    %200 = vrot.lane.b32.xlu0 %v188, 64
    %v201 = vpop.permute.xlu0 %200
    %v206 = vmax.f32 %v181, %v195
    %v207 = vmax.f32 %v183, %v197
    %v208 = vmax.f32 %v186, %v199
    %v209 = vmax.f32 %v188, %v201
    %v212 = vrot.slane %v208, 7
    %vm213 = vcmask 1041409
    %v214 = vsel %vm213, %v212, %v206
    %v216 = vrot.slane %v206, 1
    %v217 = vsel %vm213, %v208, %v216
    %218 = vrot.lane.b32.xlu0 %v217, 64
    %v219 = vpop.permute.xlu0 %218
    %v221 = vrot.slane %v206, 2
    %v222 = vrot.slane %v208, 1
    %v223 = vsel %vm213, %v222, %v221
    %v225 = vrot.slane %v206, 3
    %v226 = vrot.slane %v208, 2
    %v227 = vsel %vm213, %v226, %v225
    %228 = vrot.lane.b32.xlu0 %v227, 64
    %v229 = vpop.permute.xlu0 %228
    %v231 = vrot.slane %v206, 4
    %v232 = vrot.slane %v208, 3
    %v233 = vsel %vm213, %v232, %v231
    %v235 = vrot.slane %v206, 5
    %v236 = vrot.slane %v208, 4
    %v237 = vsel %vm213, %v236, %v235
    %238 = vrot.lane.b32.xlu0 %v237, 64
    %v239 = vpop.permute.xlu0 %238
    %v241 = vrot.slane %v206, 6
    %v242 = vrot.slane %v208, 5
    %v243 = vsel %vm213, %v242, %v241
    %v245 = vrot.slane %v206, 7
    %v246 = vrot.slane %v208, 6
    %v247 = vsel %vm213, %v246, %v245
    %248 = vrot.lane.b32.xlu0 %v247, 64
    %v249 = vpop.permute.xlu0 %248
    %v253 = vrot.slane %v209, 7
    %v254 = vsel %vm213, %v253, %v207
    %v256 = vrot.slane %v207, 1
    %v257 = vsel %vm213, %v209, %v256
    %258 = vrot.lane.b32.xlu0 %v257, 64
    %v259 = vpop.permute.xlu0 %258
    %v261 = vrot.slane %v207, 2
    %v262 = vrot.slane %v209, 1
    %v263 = vsel %vm213, %v262, %v261
    %v265 = vrot.slane %v207, 3
    %v266 = vrot.slane %v209, 2
    %v267 = vsel %vm213, %v266, %v265
    %268 = vrot.lane.b32.xlu0 %v267, 64
    %v269 = vpop.permute.xlu0 %268
    %v271 = vrot.slane %v207, 4
    %v272 = vrot.slane %v209, 3
    %v273 = vsel %vm213, %v272, %v271
    %v275 = vrot.slane %v207, 5
    %v276 = vrot.slane %v209, 4
    %v277 = vsel %vm213, %v276, %v275
    %278 = vrot.lane.b32.xlu0 %v277, 64
    %v279 = vpop.permute.xlu0 %278
    %v281 = vrot.slane %v207, 6
    %v282 = vrot.slane %v209, 5
    %v283 = vsel %vm213, %v282, %v281
    %v285 = vrot.slane %v207, 7
    %v286 = vrot.slane %v209, 6
    %v287 = vsel %vm213, %v286, %v285
    %288 = vrot.lane.b32.xlu0 %v287, 64
    %v289 = vpop.permute.xlu0 %288
    %vm291 = vcmask 523264
    %v292 = vsel %vm291, %v214, %v219
    %v293 = vsel %vm291, %v223, %v229
    %v294 = vsel %vm291, %v233, %v239
    %v295 = vsel %vm291, %v243, %v249
    %v296 = vsel %vm291, %v254, %v259
    %v297 = vsel %vm291, %v263, %v269
    %v298 = vsel %vm291, %v273, %v279
    %v299 = vsel %vm291, %v283, %v289
    %v300 = vld [vmem:[#allocation7] sm:$0xff]
    %v302 = vperm.slane %v300, 0
    %v303 = vperm.slane %v300, 1
    %v304 = vperm.slane %v300, 2
    %v305 = vperm.slane %v300, 3
    %v306 = vperm.slane %v300, 4
    %v307 = vperm.slane %v300, 5
    %v308 = vperm.slane %v300, 6
    %v309 = vperm.slane %v300, 7
    %v318 = vmul.f32 %v292, %v302
    %v319 = vmul.f32 %v293, %v303
    %v320 = vmul.f32 %v294, %v304
    %v321 = vmul.f32 %v295, %v305
    %v322 = vmul.f32 %v296, %v306
    %v323 = vmul.f32 %v297, %v307
    %v324 = vmul.f32 %v298, %v308
    %v325 = vmul.f32 %v299, %v309
    %v326 = vld [vmem:[#allocation8] sm:$0xff]
    %v328 = vperm.slane %v326, 0
    %v329 = vperm.slane %v326, 1
    %v330 = vperm.slane %v326, 2
    %v331 = vperm.slane %v326, 3
    %v332 = vperm.slane %v326, 4
    %v333 = vperm.slane %v326, 5
    %v334 = vperm.slane %v326, 6
    %v335 = vperm.slane %v326, 7
    %v344 = vadd.f32 %v318, %v328
    %v345 = vadd.f32 %v319, %v329
    %v346 = vadd.f32 %v320, %v330
    %v347 = vadd.f32 %v321, %v331
    %v348 = vadd.f32 %v322, %v332
    %v349 = vadd.f32 %v323, %v333
    %v350 = vadd.f32 %v324, %v334
    %v351 = vadd.f32 %v325, %v335
    %v352 = vmax.f32 %v344, 0.0
    %v353 = vmax.f32 %v345, 0.0
    %v354 = vmax.f32 %v346, 0.0
    %v355 = vmax.f32 %v347, 0.0
    %v356 = vmax.f32 %v348, 0.0
    %v357 = vmax.f32 %v349, 0.0
    %v358 = vmax.f32 %v350, 0.0
    %v359 = vmax.f32 %v351, 0.0
    %v360 = vpack.c.bf16 %v352, %v352
    %v361 = vpack.c.bf16 %v353, %v353
    %v362 = vpack.c.bf16 %v354, %v354
    %v363 = vpack.c.bf16 %v355, %v355
    %v364 = vpack.c.bf16 %v356, %v356
    %v365 = vpack.c.bf16 %v357, %v357
    %v366 = vpack.c.bf16 %v358, %v358
    %v367 = vpack.c.bf16 %v359, %v359
    %v368 = vld [vmem:[#allocation10] sm:$0xff]
    %v369 = vld [vmem:[#allocation10 + $0x8] sm:$0xff]
    %v370 = vld [vmem:[#allocation10 + $0x10] sm:$0xff]
    %v371 = vld [vmem:[#allocation10 + $0x18] sm:$0xff]
    %v372 = vld [vmem:[#allocation10 + $0x20] sm:$0xff]
    %v373 = vld [vmem:[#allocation10 + $0x28] sm:$0xff]
    %v374 = vld [vmem:[#allocation10 + $0x30] sm:$0xff]
    %v375 = vld [vmem:[#allocation10 + $0x38] sm:$0xff]
    %v376 = vld [vmem:[#allocation10 + $0x40] sm:$0xff]
    %v377 = vld [vmem:[#allocation10 + $0x48] sm:$0xff]
    %v378 = vld [vmem:[#allocation10 + $0x50] sm:$0xff]
    %v379 = vld [vmem:[#allocation10 + $0x58] sm:$0xff]
    %v380 = vld [vmem:[#allocation10 + $0x60] sm:$0xff]
    %v381 = vld [vmem:[#allocation10 + $0x68] sm:$0xff]
    %v382 = vld [vmem:[#allocation10 + $0x70] sm:$0xff]
    %v383 = vld [vmem:[#allocation10 + $0x78] sm:$0xff]
    %v384 = vld [vmem:[#allocation10 + $0x80] sm:$0xff]
    %v385 = vld [vmem:[#allocation10 + $0x88] sm:$0xff]
    %v386 = vld [vmem:[#allocation10 + $0x90] sm:$0xff]
    %v387 = vld [vmem:[#allocation10 + $0x98] sm:$0xff]
    %v388 = vld [vmem:[#allocation10 + $0xa0] sm:$0xff]
    %v389 = vld [vmem:[#allocation10 + $0xa8] sm:$0xff]
    %v390 = vld [vmem:[#allocation10 + $0xb0] sm:$0xff]
    %v391 = vld [vmem:[#allocation10 + $0xb8] sm:$0xff]
    %v392 = vld [vmem:[#allocation10 + $0xc0] sm:$0xff]
    %v393 = vld [vmem:[#allocation10 + $0xc8] sm:$0xff]
    %v394 = vld [vmem:[#allocation10 + $0xd0] sm:$0xff]
    %v395 = vld [vmem:[#allocation10 + $0xd8] sm:$0xff]
    %v396 = vld [vmem:[#allocation10 + $0xe0] sm:$0xff]
    %v397 = vld [vmem:[#allocation10 + $0xe8] sm:$0xff]
    %v398 = vld [vmem:[#allocation10 + $0xf0] sm:$0xff]
    %v399 = vld [vmem:[#allocation10 + $0xf8] sm:$0xff]
    %v400 = vld [vmem:[#allocation10 + $0x100] sm:$0xff]
    %v401 = vld [vmem:[#allocation10 + $0x108] sm:$0xff]
    %v402 = vld [vmem:[#allocation10 + $0x110] sm:$0xff]
    %v403 = vld [vmem:[#allocation10 + $0x118] sm:$0xff]
    %v404 = vld [vmem:[#allocation10 + $0x120] sm:$0xff]
    %v405 = vld [vmem:[#allocation10 + $0x128] sm:$0xff]
    %v406 = vld [vmem:[#allocation10 + $0x130] sm:$0xff]
    %v407 = vld [vmem:[#allocation10 + $0x138] sm:$0xff]
    %v408 = vld [vmem:[#allocation10 + $0x140] sm:$0xff]
    %v409 = vld [vmem:[#allocation10 + $0x148] sm:$0xff]
    %v410 = vld [vmem:[#allocation10 + $0x150] sm:$0xff]
    %v411 = vld [vmem:[#allocation10 + $0x158] sm:$0xff]
    %v412 = vld [vmem:[#allocation10 + $0x160] sm:$0xff]
    %v413 = vld [vmem:[#allocation10 + $0x168] sm:$0xff]
    %v414 = vld [vmem:[#allocation10 + $0x170] sm:$0xff]
    %v415 = vld [vmem:[#allocation10 + $0x178] sm:$0xff]
    %v416 = vld [vmem:[#allocation10 + $0x180] sm:$0xff]
    %v417 = vld [vmem:[#allocation10 + $0x188] sm:$0xff]
    %v418 = vld [vmem:[#allocation10 + $0x190] sm:$0xff]
    %v419 = vld [vmem:[#allocation10 + $0x198] sm:$0xff]
    %v420 = vld [vmem:[#allocation10 + $0x1a0] sm:$0xff]
    %v421 = vld [vmem:[#allocation10 + $0x1a8] sm:$0xff]
    %v422 = vld [vmem:[#allocation10 + $0x1b0] sm:$0xff]
    %v423 = vld [vmem:[#allocation10 + $0x1b8] sm:$0xff]
    %v424 = vld [vmem:[#allocation10 + $0x1c0] sm:$0xff]
    %v425 = vld [vmem:[#allocation10 + $0x1c8] sm:$0xff]
    %v426 = vld [vmem:[#allocation10 + $0x1d0] sm:$0xff]
    %v427 = vld [vmem:[#allocation10 + $0x1d8] sm:$0xff]
    %v428 = vld [vmem:[#allocation10 + $0x1e0] sm:$0xff]
    %v429 = vld [vmem:[#allocation10 + $0x1e8] sm:$0xff]
    %v430 = vld [vmem:[#allocation10 + $0x1f0] sm:$0xff]
    %v431 = vld [vmem:[#allocation10 + $0x1f8] sm:$0xff]
    %v432 = vld [vmem:[#allocation10 + $0x200] sm:$0xff]
    %v433 = vld [vmem:[#allocation10 + $0x208] sm:$0xff]
    %v434 = vld [vmem:[#allocation10 + $0x210] sm:$0xff]
    %v435 = vld [vmem:[#allocation10 + $0x218] sm:$0xff]
    %v436 = vld [vmem:[#allocation10 + $0x220] sm:$0xff]
    %v437 = vld [vmem:[#allocation10 + $0x228] sm:$0xff]
    %v438 = vld [vmem:[#allocation10 + $0x230] sm:$0xff]
    %v439 = vld [vmem:[#allocation10 + $0x238] sm:$0xff]
    %v440 = vld [vmem:[#allocation10 + $0x240] sm:$0xff]
    %v441 = vld [vmem:[#allocation10 + $0x248] sm:$0xff]
    %v442 = vld [vmem:[#allocation10 + $0x250] sm:$0xff]
    %v443 = vld [vmem:[#allocation10 + $0x258] sm:$0xff]
    %v444 = vld [vmem:[#allocation10 + $0x260] sm:$0xff]
    %v445 = vld [vmem:[#allocation10 + $0x268] sm:$0xff]
    %v446 = vld [vmem:[#allocation10 + $0x270] sm:$0xff]
    %v447 = vld [vmem:[#allocation10 + $0x278] sm:$0xff]
    %v448 = vld [vmem:[#allocation10 + $0x280] sm:$0xff]
    %v449 = vld [vmem:[#allocation10 + $0x288] sm:$0xff]
    %v450 = vld [vmem:[#allocation10 + $0x290] sm:$0xff]
    %v451 = vld [vmem:[#allocation10 + $0x298] sm:$0xff]
    %v452 = vld [vmem:[#allocation10 + $0x2a0] sm:$0xff]
    %v453 = vld [vmem:[#allocation10 + $0x2a8] sm:$0xff]
    %v454 = vld [vmem:[#allocation10 + $0x2b0] sm:$0xff]
    %v455 = vld [vmem:[#allocation10 + $0x2b8] sm:$0xff]
    %v456 = vld [vmem:[#allocation10 + $0x2c0] sm:$0xff]
    %v457 = vld [vmem:[#allocation10 + $0x2c8] sm:$0xff]
    %v458 = vld [vmem:[#allocation10 + $0x2d0] sm:$0xff]
    %v459 = vld [vmem:[#allocation10 + $0x2d8] sm:$0xff]
    %v460 = vld [vmem:[#allocation10 + $0x2e0] sm:$0xff]
    %v461 = vld [vmem:[#allocation10 + $0x2e8] sm:$0xff]
    %v462 = vld [vmem:[#allocation10 + $0x2f0] sm:$0xff]
    %v463 = vld [vmem:[#allocation10 + $0x2f8] sm:$0xff]
    %v464 = vld [vmem:[#allocation10 + $0x300] sm:$0xff]
    %v465 = vld [vmem:[#allocation10 + $0x308] sm:$0xff]
    %v466 = vld [vmem:[#allocation10 + $0x310] sm:$0xff]
    %v467 = vld [vmem:[#allocation10 + $0x318] sm:$0xff]
    %v468 = vld [vmem:[#allocation10 + $0x320] sm:$0xff]
    %v469 = vld [vmem:[#allocation10 + $0x328] sm:$0xff]
    %v470 = vld [vmem:[#allocation10 + $0x330] sm:$0xff]
    %v471 = vld [vmem:[#allocation10 + $0x338] sm:$0xff]
    %v472 = vld [vmem:[#allocation10 + $0x340] sm:$0xff]
    %v473 = vld [vmem:[#allocation10 + $0x348] sm:$0xff]
    %v474 = vld [vmem:[#allocation10 + $0x350] sm:$0xff]
    %v475 = vld [vmem:[#allocation10 + $0x358] sm:$0xff]
    %v476 = vld [vmem:[#allocation10 + $0x360] sm:$0xff]
    %v477 = vld [vmem:[#allocation10 + $0x368] sm:$0xff]
    %v478 = vld [vmem:[#allocation10 + $0x370] sm:$0xff]
    %v479 = vld [vmem:[#allocation10 + $0x378] sm:$0xff]
    %v480 = vld [vmem:[#allocation10 + $0x380] sm:$0xff]
    %v481 = vld [vmem:[#allocation10 + $0x388] sm:$0xff]
    %v482 = vld [vmem:[#allocation10 + $0x390] sm:$0xff]
    %v483 = vld [vmem:[#allocation10 + $0x398] sm:$0xff]
    %v484 = vld [vmem:[#allocation10 + $0x3a0] sm:$0xff]
    %v485 = vld [vmem:[#allocation10 + $0x3a8] sm:$0xff]
    %v486 = vld [vmem:[#allocation10 + $0x3b0] sm:$0xff]
    %v487 = vld [vmem:[#allocation10 + $0x3b8] sm:$0xff]
    %v488 = vld [vmem:[#allocation10 + $0x3c0] sm:$0xff]
    %v489 = vld [vmem:[#allocation10 + $0x3c8] sm:$0xff]
    %v490 = vld [vmem:[#allocation10 + $0x3d0] sm:$0xff]
    %v491 = vld [vmem:[#allocation10 + $0x3d8] sm:$0xff]
    %v492 = vld [vmem:[#allocation10 + $0x3e0] sm:$0xff]
    %v493 = vld [vmem:[#allocation10 + $0x3e8] sm:$0xff]
    %v494 = vld [vmem:[#allocation10 + $0x3f0] sm:$0xff]
    %v495 = vld [vmem:[#allocation10 + $0x3f8] sm:$0xff]
    %v496 = vld [vmem:[#allocation10 + $0x400] sm:$0xff]
    %v497 = vld [vmem:[#allocation10 + $0x408] sm:$0xff]
    %v498 = vld [vmem:[#allocation10 + $0x410] sm:$0xff]
    %v499 = vld [vmem:[#allocation10 + $0x418] sm:$0xff]
    %v500 = vld [vmem:[#allocation10 + $0x420] sm:$0xff]
    %v501 = vld [vmem:[#allocation10 + $0x428] sm:$0xff]
    %v502 = vld [vmem:[#allocation10 + $0x430] sm:$0xff]
    %v503 = vld [vmem:[#allocation10 + $0x438] sm:$0xff]
    %v504 = vld [vmem:[#allocation10 + $0x440] sm:$0xff]
    %v505 = vld [vmem:[#allocation10 + $0x448] sm:$0xff]
    %v506 = vld [vmem:[#allocation10 + $0x450] sm:$0xff]
    %v507 = vld [vmem:[#allocation10 + $0x458] sm:$0xff]
    %v508 = vld [vmem:[#allocation10 + $0x460] sm:$0xff]
    %v509 = vld [vmem:[#allocation10 + $0x468] sm:$0xff]
    %v510 = vld [vmem:[#allocation10 + $0x470] sm:$0xff]
    %v511 = vld [vmem:[#allocation10 + $0x478] sm:$0xff]
    %v512 = vld [vmem:[#allocation10 + $0x480] sm:$0xff]
    %v513 = vld [vmem:[#allocation10 + $0x488] sm:$0xff]
    %v514 = vld [vmem:[#allocation10 + $0x490] sm:$0xff]
    %v515 = vld [vmem:[#allocation10 + $0x498] sm:$0xff]
    %v516 = vld [vmem:[#allocation10 + $0x4a0] sm:$0xff]
    %v517 = vld [vmem:[#allocation10 + $0x4a8] sm:$0xff]
    %v518 = vld [vmem:[#allocation10 + $0x4b0] sm:$0xff]
    %v519 = vld [vmem:[#allocation10 + $0x4b8] sm:$0xff]
    %v520 = vld [vmem:[#allocation10 + $0x4c0] sm:$0xff]
    %v521 = vld [vmem:[#allocation10 + $0x4c8] sm:$0xff]
    %v522 = vld [vmem:[#allocation10 + $0x4d0] sm:$0xff]
    %v523 = vld [vmem:[#allocation10 + $0x4d8] sm:$0xff]
    %v524 = vld [vmem:[#allocation10 + $0x4e0] sm:$0xff]
    %v525 = vld [vmem:[#allocation10 + $0x4e8] sm:$0xff]
    %v526 = vld [vmem:[#allocation10 + $0x4f0] sm:$0xff]
    %v527 = vld [vmem:[#allocation10 + $0x4f8] sm:$0xff]
    %v528 = vld [vmem:[#allocation10 + $0x500] sm:$0xff]
    %v529 = vld [vmem:[#allocation10 + $0x508] sm:$0xff]
    %v530 = vld [vmem:[#allocation10 + $0x510] sm:$0xff]
    %v531 = vld [vmem:[#allocation10 + $0x518] sm:$0xff]
    %v532 = vld [vmem:[#allocation10 + $0x520] sm:$0xff]
    %v533 = vld [vmem:[#allocation10 + $0x528] sm:$0xff]
    %v534 = vld [vmem:[#allocation10 + $0x530] sm:$0xff]
    %v535 = vld [vmem:[#allocation10 + $0x538] sm:$0xff]
    %v536 = vld [vmem:[#allocation10 + $0x540] sm:$0xff]
    %v537 = vld [vmem:[#allocation10 + $0x548] sm:$0xff]
    %v538 = vld [vmem:[#allocation10 + $0x550] sm:$0xff]
    %v539 = vld [vmem:[#allocation10 + $0x558] sm:$0xff]
    %v540 = vld [vmem:[#allocation10 + $0x560] sm:$0xff]
    %v541 = vld [vmem:[#allocation10 + $0x568] sm:$0xff]
    %v542 = vld [vmem:[#allocation10 + $0x570] sm:$0xff]
    %v543 = vld [vmem:[#allocation10 + $0x578] sm:$0xff]
    %v544 = vld [vmem:[#allocation10 + $0x580] sm:$0xff]
    %v545 = vld [vmem:[#allocation10 + $0x588] sm:$0xff]
    %v546 = vld [vmem:[#allocation10 + $0x590] sm:$0xff]
    %v547 = vld [vmem:[#allocation10 + $0x598] sm:$0xff]
    %v548 = vld [vmem:[#allocation10 + $0x5a0] sm:$0xff]
    %v549 = vld [vmem:[#allocation10 + $0x5a8] sm:$0xff]
    %v550 = vld [vmem:[#allocation10 + $0x5b0] sm:$0xff]
    %v551 = vld [vmem:[#allocation10 + $0x5b8] sm:$0xff]
    %v552 = vld [vmem:[#allocation10 + $0x5c0] sm:$0xff]
    %v553 = vld [vmem:[#allocation10 + $0x5c8] sm:$0xff]
    %v554 = vld [vmem:[#allocation10 + $0x5d0] sm:$0xff]
    %v555 = vld [vmem:[#allocation10 + $0x5d8] sm:$0xff]
    %v556 = vld [vmem:[#allocation10 + $0x5e0] sm:$0xff]
    %v557 = vld [vmem:[#allocation10 + $0x5e8] sm:$0xff]
    %v558 = vld [vmem:[#allocation10 + $0x5f0] sm:$0xff]
    %v559 = vld [vmem:[#allocation10 + $0x5f8] sm:$0xff]
    %v560 = vld [vmem:[#allocation10 + $0x600] sm:$0xff]
    %v561 = vld [vmem:[#allocation10 + $0x608] sm:$0xff]
    %v562 = vld [vmem:[#allocation10 + $0x610] sm:$0xff]
    %v563 = vld [vmem:[#allocation10 + $0x618] sm:$0xff]
    %v564 = vld [vmem:[#allocation10 + $0x620] sm:$0xff]
    %v565 = vld [vmem:[#allocation10 + $0x628] sm:$0xff]
    %v566 = vld [vmem:[#allocation10 + $0x630] sm:$0xff]
    %v567 = vld [vmem:[#allocation10 + $0x638] sm:$0xff]
    %v568 = vld [vmem:[#allocation10 + $0x640] sm:$0xff]
    %v569 = vld [vmem:[#allocation10 + $0x648] sm:$0xff]
    %v570 = vld [vmem:[#allocation10 + $0x650] sm:$0xff]
    %v571 = vld [vmem:[#allocation10 + $0x658] sm:$0xff]
    %v572 = vld [vmem:[#allocation10 + $0x660] sm:$0xff]
    %v573 = vld [vmem:[#allocation10 + $0x668] sm:$0xff]
    %v574 = vld [vmem:[#allocation10 + $0x670] sm:$0xff]
    %v575 = vld [vmem:[#allocation10 + $0x678] sm:$0xff]
    %v576 = vld [vmem:[#allocation10 + $0x680] sm:$0xff]
    %v577 = vld [vmem:[#allocation10 + $0x688] sm:$0xff]
    %v578 = vld [vmem:[#allocation10 + $0x690] sm:$0xff]
    %v579 = vld [vmem:[#allocation10 + $0x698] sm:$0xff]
    %v580 = vld [vmem:[#allocation10 + $0x6a0] sm:$0xff]
    %v581 = vld [vmem:[#allocation10 + $0x6a8] sm:$0xff]
    %v582 = vld [vmem:[#allocation10 + $0x6b0] sm:$0xff]
    %v583 = vld [vmem:[#allocation10 + $0x6b8] sm:$0xff]
    %v584 = vld [vmem:[#allocation10 + $0x6c0] sm:$0xff]
    %v585 = vld [vmem:[#allocation10 + $0x6c8] sm:$0xff]
    %v586 = vld [vmem:[#allocation10 + $0x6d0] sm:$0xff]
    %v587 = vld [vmem:[#allocation10 + $0x6d8] sm:$0xff]
    %v588 = vld [vmem:[#allocation10 + $0x6e0] sm:$0xff]
    %v589 = vld [vmem:[#allocation10 + $0x6e8] sm:$0xff]
    %v590 = vld [vmem:[#allocation10 + $0x6f0] sm:$0xff]
    %v591 = vld [vmem:[#allocation10 + $0x6f8] sm:$0xff]
    %v592 = vld [vmem:[#allocation10 + $0x700] sm:$0xff]
    %v593 = vld [vmem:[#allocation10 + $0x708] sm:$0xff]
    %v594 = vld [vmem:[#allocation10 + $0x710] sm:$0xff]
    %v595 = vld [vmem:[#allocation10 + $0x718] sm:$0xff]
    %v596 = vld [vmem:[#allocation10 + $0x720] sm:$0xff]
    %v597 = vld [vmem:[#allocation10 + $0x728] sm:$0xff]
    %v598 = vld [vmem:[#allocation10 + $0x730] sm:$0xff]
    %v599 = vld [vmem:[#allocation10 + $0x738] sm:$0xff]
    %v600 = vld [vmem:[#allocation10 + $0x740] sm:$0xff]
    %v601 = vld [vmem:[#allocation10 + $0x748] sm:$0xff]
    %v602 = vld [vmem:[#allocation10 + $0x750] sm:$0xff]
    %v603 = vld [vmem:[#allocation10 + $0x758] sm:$0xff]
    %v604 = vld [vmem:[#allocation10 + $0x760] sm:$0xff]
    %v605 = vld [vmem:[#allocation10 + $0x768] sm:$0xff]
    %v606 = vld [vmem:[#allocation10 + $0x770] sm:$0xff]
    %v607 = vld [vmem:[#allocation10 + $0x778] sm:$0xff]
    %v608 = vld [vmem:[#allocation10 + $0x780] sm:$0xff]
    %v609 = vld [vmem:[#allocation10 + $0x788] sm:$0xff]
    %v610 = vld [vmem:[#allocation10 + $0x790] sm:$0xff]
    %v611 = vld [vmem:[#allocation10 + $0x798] sm:$0xff]
    %v612 = vld [vmem:[#allocation10 + $0x7a0] sm:$0xff]
    %v613 = vld [vmem:[#allocation10 + $0x7a8] sm:$0xff]
    %v614 = vld [vmem:[#allocation10 + $0x7b0] sm:$0xff]
    %v615 = vld [vmem:[#allocation10 + $0x7b8] sm:$0xff]
    %v616 = vld [vmem:[#allocation10 + $0x7c0] sm:$0xff]
    %v617 = vld [vmem:[#allocation10 + $0x7c8] sm:$0xff]
    %v618 = vld [vmem:[#allocation10 + $0x7d0] sm:$0xff]
    %v619 = vld [vmem:[#allocation10 + $0x7d8] sm:$0xff]
    %v620 = vld [vmem:[#allocation10 + $0x7e0] sm:$0xff]
    %v621 = vld [vmem:[#allocation10 + $0x7e8] sm:$0xff]
    %v622 = vld [vmem:[#allocation10 + $0x7f0] sm:$0xff]
    %v623 = vld [vmem:[#allocation10 + $0x7f8] sm:$0xff]
    %v624 = vld [vmem:[%s5] sm:$0xf]
    %v626 = vperm.slane %v624, 0
    %v627 = vperm.slane %v624, 1
    %v628 = vperm.slane %v624, 2
    %v629 = vperm.slane %v624, 3
    %v890 = vunpack.c.l.b16 %v368
    %v891 = vunpack.c.h.b16 %v368
    %v892 = vunpack.c.l.b16 %v369
    %v893 = vunpack.c.h.b16 %v369
    %v894 = vunpack.c.l.b16 %v370
    %v895 = vunpack.c.h.b16 %v370
    %v896 = vunpack.c.l.b16 %v371
    %v897 = vunpack.c.h.b16 %v371
    %v898 = vunpack.c.l.b16 %v372
    %v899 = vunpack.c.h.b16 %v372
    %v900 = vunpack.c.l.b16 %v373
    %v901 = vunpack.c.h.b16 %v373
    %v902 = vunpack.c.l.b16 %v374
    %v903 = vunpack.c.h.b16 %v374
    %v904 = vunpack.c.l.b16 %v375
    %v905 = vunpack.c.h.b16 %v375
    %v906 = vunpack.c.l.b16 %v376
    %v907 = vunpack.c.h.b16 %v376
    %v908 = vunpack.c.l.b16 %v377
    %v909 = vunpack.c.h.b16 %v377
    %v910 = vunpack.c.l.b16 %v378
    %v911 = vunpack.c.h.b16 %v378
    %v912 = vunpack.c.l.b16 %v379
    %v913 = vunpack.c.h.b16 %v379
    %v914 = vunpack.c.l.b16 %v380
    %v915 = vunpack.c.h.b16 %v380
    %v916 = vunpack.c.l.b16 %v381
    %v917 = vunpack.c.h.b16 %v381
    %v918 = vunpack.c.l.b16 %v382
    %v919 = vunpack.c.h.b16 %v382
    %v920 = vunpack.c.l.b16 %v383
    %v921 = vunpack.c.h.b16 %v383
    %v922 = vunpack.c.l.b16 %v384
    %v923 = vunpack.c.h.b16 %v384
    %v924 = vunpack.c.l.b16 %v385
    %v925 = vunpack.c.h.b16 %v385
    %v926 = vunpack.c.l.b16 %v386
    %v927 = vunpack.c.h.b16 %v386
    %v928 = vunpack.c.l.b16 %v387
    %v929 = vunpack.c.h.b16 %v387
    %v930 = vunpack.c.l.b16 %v388
    %v931 = vunpack.c.h.b16 %v388
    %v932 = vunpack.c.l.b16 %v389
    %v933 = vunpack.c.h.b16 %v389
    %v934 = vunpack.c.l.b16 %v390
    %v935 = vunpack.c.h.b16 %v390
    %v936 = vunpack.c.l.b16 %v391
    %v937 = vunpack.c.h.b16 %v391
    %v938 = vunpack.c.l.b16 %v392
    %v939 = vunpack.c.h.b16 %v392
    %v940 = vunpack.c.l.b16 %v393
    %v941 = vunpack.c.h.b16 %v393
    %v942 = vunpack.c.l.b16 %v394
    %v943 = vunpack.c.h.b16 %v394
    %v944 = vunpack.c.l.b16 %v395
    %v945 = vunpack.c.h.b16 %v395
    %v946 = vunpack.c.l.b16 %v396
    %v947 = vunpack.c.h.b16 %v396
    %v948 = vunpack.c.l.b16 %v397
    %v949 = vunpack.c.h.b16 %v397
    %v950 = vunpack.c.l.b16 %v398
    %v951 = vunpack.c.h.b16 %v398
    %v952 = vunpack.c.l.b16 %v399
    %v953 = vunpack.c.h.b16 %v399
    %v954 = vunpack.c.l.b16 %v400
    %v955 = vunpack.c.h.b16 %v400
    %v956 = vunpack.c.l.b16 %v401
    %v957 = vunpack.c.h.b16 %v401
    %v958 = vunpack.c.l.b16 %v402
    %v959 = vunpack.c.h.b16 %v402
    %v960 = vunpack.c.l.b16 %v403
    %v961 = vunpack.c.h.b16 %v403
    %v962 = vunpack.c.l.b16 %v404
    %v963 = vunpack.c.h.b16 %v404
    %v964 = vunpack.c.l.b16 %v405
    %v965 = vunpack.c.h.b16 %v405
    %v966 = vunpack.c.l.b16 %v406
    %v967 = vunpack.c.h.b16 %v406
    %v968 = vunpack.c.l.b16 %v407
    %v969 = vunpack.c.h.b16 %v407
    %v970 = vunpack.c.l.b16 %v408
    %v971 = vunpack.c.h.b16 %v408
    %v972 = vunpack.c.l.b16 %v409
    %v973 = vunpack.c.h.b16 %v409
    %v974 = vunpack.c.l.b16 %v410
    %v975 = vunpack.c.h.b16 %v410
    %v976 = vunpack.c.l.b16 %v411
    %v977 = vunpack.c.h.b16 %v411
    %v978 = vunpack.c.l.b16 %v412
    %v979 = vunpack.c.h.b16 %v412
    %v980 = vunpack.c.l.b16 %v413
    %v981 = vunpack.c.h.b16 %v413
    %v982 = vunpack.c.l.b16 %v414
    %v983 = vunpack.c.h.b16 %v414
    %v984 = vunpack.c.l.b16 %v415
    %v985 = vunpack.c.h.b16 %v415
    %v986 = vunpack.c.l.b16 %v416
    %v987 = vunpack.c.h.b16 %v416
    %v988 = vunpack.c.l.b16 %v417
    %v989 = vunpack.c.h.b16 %v417
    %v990 = vunpack.c.l.b16 %v418
    %v991 = vunpack.c.h.b16 %v418
    %v992 = vunpack.c.l.b16 %v419
    %v993 = vunpack.c.h.b16 %v419
    %v994 = vunpack.c.l.b16 %v420
    %v995 = vunpack.c.h.b16 %v420
    %v996 = vunpack.c.l.b16 %v421
    %v997 = vunpack.c.h.b16 %v421
    %v998 = vunpack.c.l.b16 %v422
    %v999 = vunpack.c.h.b16 %v422
    %v1000 = vunpack.c.l.b16 %v423
    %v1001 = vunpack.c.h.b16 %v423
    %v1002 = vunpack.c.l.b16 %v424
    %v1003 = vunpack.c.h.b16 %v424
    %v1004 = vunpack.c.l.b16 %v425
    %v1005 = vunpack.c.h.b16 %v425
    %v1006 = vunpack.c.l.b16 %v426
    %v1007 = vunpack.c.h.b16 %v426
    %v1008 = vunpack.c.l.b16 %v427
    %v1009 = vunpack.c.h.b16 %v427
    %v1010 = vunpack.c.l.b16 %v428
    %v1011 = vunpack.c.h.b16 %v428
    %v1012 = vunpack.c.l.b16 %v429
    %v1013 = vunpack.c.h.b16 %v429
    %v1014 = vunpack.c.l.b16 %v430
    %v1015 = vunpack.c.h.b16 %v430
    %v1016 = vunpack.c.l.b16 %v431
    %v1017 = vunpack.c.h.b16 %v431
    %v1018 = vunpack.c.l.b16 %v432
    %v1019 = vunpack.c.h.b16 %v432
    %v1020 = vunpack.c.l.b16 %v433
    %v1021 = vunpack.c.h.b16 %v433
    %v1022 = vunpack.c.l.b16 %v434
    %v1023 = vunpack.c.h.b16 %v434
    %v1024 = vunpack.c.l.b16 %v435
    %v1025 = vunpack.c.h.b16 %v435
    %v1026 = vunpack.c.l.b16 %v436
    %v1027 = vunpack.c.h.b16 %v436
    %v1028 = vunpack.c.l.b16 %v437
    %v1029 = vunpack.c.h.b16 %v437
    %v1030 = vunpack.c.l.b16 %v438
    %v1031 = vunpack.c.h.b16 %v438
    %v1032 = vunpack.c.l.b16 %v439
    %v1033 = vunpack.c.h.b16 %v439
    %v1034 = vunpack.c.l.b16 %v440
    %v1035 = vunpack.c.h.b16 %v440
    %v1036 = vunpack.c.l.b16 %v441
    %v1037 = vunpack.c.h.b16 %v441
    %v1038 = vunpack.c.l.b16 %v442
    %v1039 = vunpack.c.h.b16 %v442
    %v1040 = vunpack.c.l.b16 %v443
    %v1041 = vunpack.c.h.b16 %v443
    %v1042 = vunpack.c.l.b16 %v444
    %v1043 = vunpack.c.h.b16 %v444
    %v1044 = vunpack.c.l.b16 %v445
    %v1045 = vunpack.c.h.b16 %v445
    %v1046 = vunpack.c.l.b16 %v446
    %v1047 = vunpack.c.h.b16 %v446
    %v1048 = vunpack.c.l.b16 %v447
    %v1049 = vunpack.c.h.b16 %v447
    %v1050 = vunpack.c.l.b16 %v448
    %v1051 = vunpack.c.h.b16 %v448
    %v1052 = vunpack.c.l.b16 %v449
    %v1053 = vunpack.c.h.b16 %v449
    %v1054 = vunpack.c.l.b16 %v450
    %v1055 = vunpack.c.h.b16 %v450
    %v1056 = vunpack.c.l.b16 %v451
    %v1057 = vunpack.c.h.b16 %v451
    %v1058 = vunpack.c.l.b16 %v452
    %v1059 = vunpack.c.h.b16 %v452
    %v1060 = vunpack.c.l.b16 %v453
    %v1061 = vunpack.c.h.b16 %v453
    %v1062 = vunpack.c.l.b16 %v454
    %v1063 = vunpack.c.h.b16 %v454
    %v1064 = vunpack.c.l.b16 %v455
    %v1065 = vunpack.c.h.b16 %v455
    %v1066 = vunpack.c.l.b16 %v456
    %v1067 = vunpack.c.h.b16 %v456
    %v1068 = vunpack.c.l.b16 %v457
    %v1069 = vunpack.c.h.b16 %v457
    %v1070 = vunpack.c.l.b16 %v458
    %v1071 = vunpack.c.h.b16 %v458
    %v1072 = vunpack.c.l.b16 %v459
    %v1073 = vunpack.c.h.b16 %v459
    %v1074 = vunpack.c.l.b16 %v460
    %v1075 = vunpack.c.h.b16 %v460
    %v1076 = vunpack.c.l.b16 %v461
    %v1077 = vunpack.c.h.b16 %v461
    %v1078 = vunpack.c.l.b16 %v462
    %v1079 = vunpack.c.h.b16 %v462
    %v1080 = vunpack.c.l.b16 %v463
    %v1081 = vunpack.c.h.b16 %v463
    %v1082 = vunpack.c.l.b16 %v464
    %v1083 = vunpack.c.h.b16 %v464
    %v1084 = vunpack.c.l.b16 %v465
    %v1085 = vunpack.c.h.b16 %v465
    %v1086 = vunpack.c.l.b16 %v466
    %v1087 = vunpack.c.h.b16 %v466
    %v1088 = vunpack.c.l.b16 %v467
    %v1089 = vunpack.c.h.b16 %v467
    %v1090 = vunpack.c.l.b16 %v468
    %v1091 = vunpack.c.h.b16 %v468
    %v1092 = vunpack.c.l.b16 %v469
    %v1093 = vunpack.c.h.b16 %v469
    %v1094 = vunpack.c.l.b16 %v470
    %v1095 = vunpack.c.h.b16 %v470
    %v1096 = vunpack.c.l.b16 %v471
    %v1097 = vunpack.c.h.b16 %v471
    %v1098 = vunpack.c.l.b16 %v472
    %v1099 = vunpack.c.h.b16 %v472
    %v1100 = vunpack.c.l.b16 %v473
    %v1101 = vunpack.c.h.b16 %v473
    %v1102 = vunpack.c.l.b16 %v474
    %v1103 = vunpack.c.h.b16 %v474
    %v1104 = vunpack.c.l.b16 %v475
    %v1105 = vunpack.c.h.b16 %v475
    %v1106 = vunpack.c.l.b16 %v476
    %v1107 = vunpack.c.h.b16 %v476
    %v1108 = vunpack.c.l.b16 %v477
    %v1109 = vunpack.c.h.b16 %v477
    %v1110 = vunpack.c.l.b16 %v478
    %v1111 = vunpack.c.h.b16 %v478
    %v1112 = vunpack.c.l.b16 %v479
    %v1113 = vunpack.c.h.b16 %v479
    %v1114 = vunpack.c.l.b16 %v480
    %v1115 = vunpack.c.h.b16 %v480
    %v1116 = vunpack.c.l.b16 %v481
    %v1117 = vunpack.c.h.b16 %v481
    %v1118 = vunpack.c.l.b16 %v482
    %v1119 = vunpack.c.h.b16 %v482
    %v1120 = vunpack.c.l.b16 %v483
    %v1121 = vunpack.c.h.b16 %v483
    %v1122 = vunpack.c.l.b16 %v484
    %v1123 = vunpack.c.h.b16 %v484
    %v1124 = vunpack.c.l.b16 %v485
    %v1125 = vunpack.c.h.b16 %v485
    %v1126 = vunpack.c.l.b16 %v486
    %v1127 = vunpack.c.h.b16 %v486
    %v1128 = vunpack.c.l.b16 %v487
    %v1129 = vunpack.c.h.b16 %v487
    %v1130 = vunpack.c.l.b16 %v488
    %v1131 = vunpack.c.h.b16 %v488
    %v1132 = vunpack.c.l.b16 %v489
    %v1133 = vunpack.c.h.b16 %v489
    %v1134 = vunpack.c.l.b16 %v490
    %v1135 = vunpack.c.h.b16 %v490
    %v1136 = vunpack.c.l.b16 %v491
    %v1137 = vunpack.c.h.b16 %v491
    %v1138 = vunpack.c.l.b16 %v492
    %v1139 = vunpack.c.h.b16 %v492
    %v1140 = vunpack.c.l.b16 %v493
    %v1141 = vunpack.c.h.b16 %v493
    %v1142 = vunpack.c.l.b16 %v494
    %v1143 = vunpack.c.h.b16 %v494
    %v1144 = vunpack.c.l.b16 %v495
    %v1145 = vunpack.c.h.b16 %v495
    %v1146 = vunpack.c.l.b16 %v496
    %v1147 = vunpack.c.h.b16 %v496
    %v1148 = vunpack.c.l.b16 %v497
    %v1149 = vunpack.c.h.b16 %v497
    %v1150 = vunpack.c.l.b16 %v498
    %v1151 = vunpack.c.h.b16 %v498
    %v1152 = vunpack.c.l.b16 %v499
    %v1153 = vunpack.c.h.b16 %v499
    %v1154 = vunpack.c.l.b16 %v500
    %v1155 = vunpack.c.h.b16 %v500
    %v1156 = vunpack.c.l.b16 %v501
    %v1157 = vunpack.c.h.b16 %v501
    %v1158 = vunpack.c.l.b16 %v502
    %v1159 = vunpack.c.h.b16 %v502
    %v1160 = vunpack.c.l.b16 %v503
    %v1161 = vunpack.c.h.b16 %v503
    %v1162 = vunpack.c.l.b16 %v504
    %v1163 = vunpack.c.h.b16 %v504
    %v1164 = vunpack.c.l.b16 %v505
    %v1165 = vunpack.c.h.b16 %v505
    %v1166 = vunpack.c.l.b16 %v506
    %v1167 = vunpack.c.h.b16 %v506
    %v1168 = vunpack.c.l.b16 %v507
    %v1169 = vunpack.c.h.b16 %v507
    %v1170 = vunpack.c.l.b16 %v508
    %v1171 = vunpack.c.h.b16 %v508
    %v1172 = vunpack.c.l.b16 %v509
    %v1173 = vunpack.c.h.b16 %v509
    %v1174 = vunpack.c.l.b16 %v510
    %v1175 = vunpack.c.h.b16 %v510
    %v1176 = vunpack.c.l.b16 %v511
    %v1177 = vunpack.c.h.b16 %v511
    %v1178 = vunpack.c.l.b16 %v512
    %v1179 = vunpack.c.h.b16 %v512
    %v1180 = vunpack.c.l.b16 %v513
    %v1181 = vunpack.c.h.b16 %v513
    %v1182 = vunpack.c.l.b16 %v514
    %v1183 = vunpack.c.h.b16 %v514
    %v1184 = vunpack.c.l.b16 %v515
    %v1185 = vunpack.c.h.b16 %v515
    %v1186 = vunpack.c.l.b16 %v516
    %v1187 = vunpack.c.h.b16 %v516
    %v1188 = vunpack.c.l.b16 %v517
    %v1189 = vunpack.c.h.b16 %v517
    %v1190 = vunpack.c.l.b16 %v518
    %v1191 = vunpack.c.h.b16 %v518
    %v1192 = vunpack.c.l.b16 %v519
    %v1193 = vunpack.c.h.b16 %v519
    %v1194 = vunpack.c.l.b16 %v520
    %v1195 = vunpack.c.h.b16 %v520
    %v1196 = vunpack.c.l.b16 %v521
    %v1197 = vunpack.c.h.b16 %v521
    %v1198 = vunpack.c.l.b16 %v522
    %v1199 = vunpack.c.h.b16 %v522
    %v1200 = vunpack.c.l.b16 %v523
    %v1201 = vunpack.c.h.b16 %v523
    %v1202 = vunpack.c.l.b16 %v524
    %v1203 = vunpack.c.h.b16 %v524
    %v1204 = vunpack.c.l.b16 %v525
    %v1205 = vunpack.c.h.b16 %v525
    %v1206 = vunpack.c.l.b16 %v526
    %v1207 = vunpack.c.h.b16 %v526
    %v1208 = vunpack.c.l.b16 %v527
    %v1209 = vunpack.c.h.b16 %v527
    %v1210 = vunpack.c.l.b16 %v528
    %v1211 = vunpack.c.h.b16 %v528
    %v1212 = vunpack.c.l.b16 %v529
    %v1213 = vunpack.c.h.b16 %v529
    %v1214 = vunpack.c.l.b16 %v530
    %v1215 = vunpack.c.h.b16 %v530
    %v1216 = vunpack.c.l.b16 %v531
    %v1217 = vunpack.c.h.b16 %v531
    %v1218 = vunpack.c.l.b16 %v532
    %v1219 = vunpack.c.h.b16 %v532
    %v1220 = vunpack.c.l.b16 %v533
    %v1221 = vunpack.c.h.b16 %v533
    %v1222 = vunpack.c.l.b16 %v534
    %v1223 = vunpack.c.h.b16 %v534
    %v1224 = vunpack.c.l.b16 %v535
    %v1225 = vunpack.c.h.b16 %v535
    %v1226 = vunpack.c.l.b16 %v536
    %v1227 = vunpack.c.h.b16 %v536
    %v1228 = vunpack.c.l.b16 %v537
    %v1229 = vunpack.c.h.b16 %v537
    %v1230 = vunpack.c.l.b16 %v538
    %v1231 = vunpack.c.h.b16 %v538
    %v1232 = vunpack.c.l.b16 %v539
    %v1233 = vunpack.c.h.b16 %v539
    %v1234 = vunpack.c.l.b16 %v540
    %v1235 = vunpack.c.h.b16 %v540
    %v1236 = vunpack.c.l.b16 %v541
    %v1237 = vunpack.c.h.b16 %v541
    %v1238 = vunpack.c.l.b16 %v542
    %v1239 = vunpack.c.h.b16 %v542
    %v1240 = vunpack.c.l.b16 %v543
    %v1241 = vunpack.c.h.b16 %v543
    %v1242 = vunpack.c.l.b16 %v544
    %v1243 = vunpack.c.h.b16 %v544
    %v1244 = vunpack.c.l.b16 %v545
    %v1245 = vunpack.c.h.b16 %v545
    %v1246 = vunpack.c.l.b16 %v546
    %v1247 = vunpack.c.h.b16 %v546
    %v1248 = vunpack.c.l.b16 %v547
    %v1249 = vunpack.c.h.b16 %v547
    %v1250 = vunpack.c.l.b16 %v548
    %v1251 = vunpack.c.h.b16 %v548
    %v1252 = vunpack.c.l.b16 %v549
    %v1253 = vunpack.c.h.b16 %v549
    %v1254 = vunpack.c.l.b16 %v550
    %v1255 = vunpack.c.h.b16 %v550
    %v1256 = vunpack.c.l.b16 %v551
    %v1257 = vunpack.c.h.b16 %v551
    %v1258 = vunpack.c.l.b16 %v552
    %v1259 = vunpack.c.h.b16 %v552
    %v1260 = vunpack.c.l.b16 %v553
    %v1261 = vunpack.c.h.b16 %v553
    %v1262 = vunpack.c.l.b16 %v554
    %v1263 = vunpack.c.h.b16 %v554
    %v1264 = vunpack.c.l.b16 %v555
    %v1265 = vunpack.c.h.b16 %v555
    %v1266 = vunpack.c.l.b16 %v556
    %v1267 = vunpack.c.h.b16 %v556
    %v1268 = vunpack.c.l.b16 %v557
    %v1269 = vunpack.c.h.b16 %v557
    %v1270 = vunpack.c.l.b16 %v558
    %v1271 = vunpack.c.h.b16 %v558
    %v1272 = vunpack.c.l.b16 %v559
    %v1273 = vunpack.c.h.b16 %v559
    %v1274 = vunpack.c.l.b16 %v560
    %v1275 = vunpack.c.h.b16 %v560
    %v1276 = vunpack.c.l.b16 %v561
    %v1277 = vunpack.c.h.b16 %v561
    %v1278 = vunpack.c.l.b16 %v562
    %v1279 = vunpack.c.h.b16 %v562
    %v1280 = vunpack.c.l.b16 %v563
    %v1281 = vunpack.c.h.b16 %v563
    %v1282 = vunpack.c.l.b16 %v564
    %v1283 = vunpack.c.h.b16 %v564
    %v1284 = vunpack.c.l.b16 %v565
    %v1285 = vunpack.c.h.b16 %v565
    %v1286 = vunpack.c.l.b16 %v566
    %v1287 = vunpack.c.h.b16 %v566
    %v1288 = vunpack.c.l.b16 %v567
    %v1289 = vunpack.c.h.b16 %v567
    %v1290 = vunpack.c.l.b16 %v568
    %v1291 = vunpack.c.h.b16 %v568
    %v1292 = vunpack.c.l.b16 %v569
    %v1293 = vunpack.c.h.b16 %v569
    %v1294 = vunpack.c.l.b16 %v570
    %v1295 = vunpack.c.h.b16 %v570
    %v1296 = vunpack.c.l.b16 %v571
    %v1297 = vunpack.c.h.b16 %v571
    %v1298 = vunpack.c.l.b16 %v572
    %v1299 = vunpack.c.h.b16 %v572
    %v1300 = vunpack.c.l.b16 %v573
    %v1301 = vunpack.c.h.b16 %v573
    %v1302 = vunpack.c.l.b16 %v574
    %v1303 = vunpack.c.h.b16 %v574
    %v1304 = vunpack.c.l.b16 %v575
    %v1305 = vunpack.c.h.b16 %v575
    %v1306 = vunpack.c.l.b16 %v576
    %v1307 = vunpack.c.h.b16 %v576
    %v1308 = vunpack.c.l.b16 %v577
    %v1309 = vunpack.c.h.b16 %v577
    %v1310 = vunpack.c.l.b16 %v578
    %v1311 = vunpack.c.h.b16 %v578
    %v1312 = vunpack.c.l.b16 %v579
    %v1313 = vunpack.c.h.b16 %v579
    %v1314 = vunpack.c.l.b16 %v580
    %v1315 = vunpack.c.h.b16 %v580
    %v1316 = vunpack.c.l.b16 %v581
    %v1317 = vunpack.c.h.b16 %v581
    %v1318 = vunpack.c.l.b16 %v582
    %v1319 = vunpack.c.h.b16 %v582
    %v1320 = vunpack.c.l.b16 %v583
    %v1321 = vunpack.c.h.b16 %v583
    %v1322 = vunpack.c.l.b16 %v584
    %v1323 = vunpack.c.h.b16 %v584
    %v1324 = vunpack.c.l.b16 %v585
    %v1325 = vunpack.c.h.b16 %v585
    %v1326 = vunpack.c.l.b16 %v586
    %v1327 = vunpack.c.h.b16 %v586
    %v1328 = vunpack.c.l.b16 %v587
    %v1329 = vunpack.c.h.b16 %v587
    %v1330 = vunpack.c.l.b16 %v588
    %v1331 = vunpack.c.h.b16 %v588
    %v1332 = vunpack.c.l.b16 %v589
    %v1333 = vunpack.c.h.b16 %v589
    %v1334 = vunpack.c.l.b16 %v590
    %v1335 = vunpack.c.h.b16 %v590
    %v1336 = vunpack.c.l.b16 %v591
    %v1337 = vunpack.c.h.b16 %v591
    %v1338 = vunpack.c.l.b16 %v592
    %v1339 = vunpack.c.h.b16 %v592
    %v1340 = vunpack.c.l.b16 %v593
    %v1341 = vunpack.c.h.b16 %v593
    %v1342 = vunpack.c.l.b16 %v594
    %v1343 = vunpack.c.h.b16 %v594
    %v1344 = vunpack.c.l.b16 %v595
    %v1345 = vunpack.c.h.b16 %v595
    %v1346 = vunpack.c.l.b16 %v596
    %v1347 = vunpack.c.h.b16 %v596
    %v1348 = vunpack.c.l.b16 %v597
    %v1349 = vunpack.c.h.b16 %v597
    %v1350 = vunpack.c.l.b16 %v598
    %v1351 = vunpack.c.h.b16 %v598
    %v1352 = vunpack.c.l.b16 %v599
    %v1353 = vunpack.c.h.b16 %v599
    %v1354 = vunpack.c.l.b16 %v600
    %v1355 = vunpack.c.h.b16 %v600
    %v1356 = vunpack.c.l.b16 %v601
    %v1357 = vunpack.c.h.b16 %v601
    %v1358 = vunpack.c.l.b16 %v602
    %v1359 = vunpack.c.h.b16 %v602
    %v1360 = vunpack.c.l.b16 %v603
    %v1361 = vunpack.c.h.b16 %v603
    %v1362 = vunpack.c.l.b16 %v604
    %v1363 = vunpack.c.h.b16 %v604
    %v1364 = vunpack.c.l.b16 %v605
    %v1365 = vunpack.c.h.b16 %v605
    %v1366 = vunpack.c.l.b16 %v606
    %v1367 = vunpack.c.h.b16 %v606
    %v1368 = vunpack.c.l.b16 %v607
    %v1369 = vunpack.c.h.b16 %v607
    %v1370 = vunpack.c.l.b16 %v608
    %v1371 = vunpack.c.h.b16 %v608
    %v1372 = vunpack.c.l.b16 %v609
    %v1373 = vunpack.c.h.b16 %v609
    %v1374 = vunpack.c.l.b16 %v610
    %v1375 = vunpack.c.h.b16 %v610
    %v1376 = vunpack.c.l.b16 %v611
    %v1377 = vunpack.c.h.b16 %v611
    %v1378 = vunpack.c.l.b16 %v612
    %v1379 = vunpack.c.h.b16 %v612
    %v1380 = vunpack.c.l.b16 %v613
    %v1381 = vunpack.c.h.b16 %v613
    %v1382 = vunpack.c.l.b16 %v614
    %v1383 = vunpack.c.h.b16 %v614
    %v1384 = vunpack.c.l.b16 %v615
    %v1385 = vunpack.c.h.b16 %v615
    %v1386 = vunpack.c.l.b16 %v616
    %v1387 = vunpack.c.h.b16 %v616
    %v1388 = vunpack.c.l.b16 %v617
    %v1389 = vunpack.c.h.b16 %v617
    %v1390 = vunpack.c.l.b16 %v618
    %v1391 = vunpack.c.h.b16 %v618
    %v1392 = vunpack.c.l.b16 %v619
    %v1393 = vunpack.c.h.b16 %v619
    %v1394 = vunpack.c.l.b16 %v620
    %v1395 = vunpack.c.h.b16 %v620
    %v1396 = vunpack.c.l.b16 %v621
    %v1397 = vunpack.c.h.b16 %v621
    %v1398 = vunpack.c.l.b16 %v622
    %v1399 = vunpack.c.h.b16 %v622
    %v1400 = vunpack.c.l.b16 %v623
    %v1401 = vunpack.c.h.b16 %v623
    %v1402 = vpack.c.b16 %v894, %v890
    %v1403 = vpack.c.b16 %v895, %v891
    %v1404 = vpack.c.b16 %v896, %v892
    %v1405 = vpack.c.b16 %v897, %v893
    %v1406 = vpack.c.b16 %v902, %v898
    %v1407 = vpack.c.b16 %v903, %v899
    %v1408 = vpack.c.b16 %v904, %v900
    %v1409 = vpack.c.b16 %v905, %v901
    %v1410 = vpack.c.b16 %v910, %v906
    %v1411 = vpack.c.b16 %v911, %v907
    %v1412 = vpack.c.b16 %v912, %v908
    %v1413 = vpack.c.b16 %v913, %v909
    %v1414 = vpack.c.b16 %v918, %v914
    %v1415 = vpack.c.b16 %v919, %v915
    %v1416 = vpack.c.b16 %v920, %v916
    %v1417 = vpack.c.b16 %v921, %v917
    %v1418 = vpack.c.b16 %v926, %v922
    %v1419 = vpack.c.b16 %v927, %v923
    %v1420 = vpack.c.b16 %v928, %v924
    %v1421 = vpack.c.b16 %v929, %v925
    %v1422 = vpack.c.b16 %v934, %v930
    %v1423 = vpack.c.b16 %v935, %v931
    %v1424 = vpack.c.b16 %v936, %v932
    %v1425 = vpack.c.b16 %v937, %v933
    %v1426 = vpack.c.b16 %v942, %v938
    %v1427 = vpack.c.b16 %v943, %v939
    %v1428 = vpack.c.b16 %v944, %v940
    %v1429 = vpack.c.b16 %v945, %v941
    %v1430 = vpack.c.b16 %v950, %v946
    %v1431 = vpack.c.b16 %v951, %v947
    %v1432 = vpack.c.b16 %v952, %v948
    %v1433 = vpack.c.b16 %v953, %v949
    %v1434 = vpack.c.b16 %v958, %v954
    %v1435 = vpack.c.b16 %v959, %v955
    %v1436 = vpack.c.b16 %v960, %v956
    %v1437 = vpack.c.b16 %v961, %v957
    %v1438 = vpack.c.b16 %v966, %v962
    %v1439 = vpack.c.b16 %v967, %v963
    %v1440 = vpack.c.b16 %v968, %v964
    %v1441 = vpack.c.b16 %v969, %v965
    %v1442 = vpack.c.b16 %v974, %v970
    %v1443 = vpack.c.b16 %v975, %v971
    %v1444 = vpack.c.b16 %v976, %v972
    %v1445 = vpack.c.b16 %v977, %v973
    %v1446 = vpack.c.b16 %v982, %v978
    %v1447 = vpack.c.b16 %v983, %v979
    %v1448 = vpack.c.b16 %v984, %v980
    %v1449 = vpack.c.b16 %v985, %v981
    %v1450 = vpack.c.b16 %v990, %v986
    %v1451 = vpack.c.b16 %v991, %v987
    %v1452 = vpack.c.b16 %v992, %v988
    %v1453 = vpack.c.b16 %v993, %v989
    %v1454 = vpack.c.b16 %v998, %v994
    %v1455 = vpack.c.b16 %v999, %v995
    %v1456 = vpack.c.b16 %v1000, %v996
    %v1457 = vpack.c.b16 %v1001, %v997
    %v1458 = vpack.c.b16 %v1006, %v1002
    %v1459 = vpack.c.b16 %v1007, %v1003
    %v1460 = vpack.c.b16 %v1008, %v1004
    %v1461 = vpack.c.b16 %v1009, %v1005
    %v1462 = vpack.c.b16 %v1014, %v1010
    %v1463 = vpack.c.b16 %v1015, %v1011
    %v1464 = vpack.c.b16 %v1016, %v1012
    %v1465 = vpack.c.b16 %v1017, %v1013
    %v1466 = vpack.c.b16 %v1022, %v1018
    %v1467 = vpack.c.b16 %v1023, %v1019
    %v1468 = vpack.c.b16 %v1024, %v1020
    %v1469 = vpack.c.b16 %v1025, %v1021
    %v1470 = vpack.c.b16 %v1030, %v1026
    %v1471 = vpack.c.b16 %v1031, %v1027
    %v1472 = vpack.c.b16 %v1032, %v1028
    %v1473 = vpack.c.b16 %v1033, %v1029
    %v1474 = vpack.c.b16 %v1038, %v1034
    %v1475 = vpack.c.b16 %v1039, %v1035
    %v1476 = vpack.c.b16 %v1040, %v1036
    %v1477 = vpack.c.b16 %v1041, %v1037
    %v1478 = vpack.c.b16 %v1046, %v1042
    %v1479 = vpack.c.b16 %v1047, %v1043
    %v1480 = vpack.c.b16 %v1048, %v1044
    %v1481 = vpack.c.b16 %v1049, %v1045
    %v1482 = vpack.c.b16 %v1054, %v1050
    %v1483 = vpack.c.b16 %v1055, %v1051
    %v1484 = vpack.c.b16 %v1056, %v1052
    %v1485 = vpack.c.b16 %v1057, %v1053
    %v1486 = vpack.c.b16 %v1062, %v1058
    %v1487 = vpack.c.b16 %v1063, %v1059
    %v1488 = vpack.c.b16 %v1064, %v1060
    %v1489 = vpack.c.b16 %v1065, %v1061
    %v1490 = vpack.c.b16 %v1070, %v1066
    %v1491 = vpack.c.b16 %v1071, %v1067
    %v1492 = vpack.c.b16 %v1072, %v1068
    %v1493 = vpack.c.b16 %v1073, %v1069
    %v1494 = vpack.c.b16 %v1078, %v1074
    %v1495 = vpack.c.b16 %v1079, %v1075
    %v1496 = vpack.c.b16 %v1080, %v1076
    %v1497 = vpack.c.b16 %v1081, %v1077
    %v1498 = vpack.c.b16 %v1086, %v1082
    %v1499 = vpack.c.b16 %v1087, %v1083
    %v1500 = vpack.c.b16 %v1088, %v1084
    %v1501 = vpack.c.b16 %v1089, %v1085
    %v1502 = vpack.c.b16 %v1094, %v1090
    %v1503 = vpack.c.b16 %v1095, %v1091
    %v1504 = vpack.c.b16 %v1096, %v1092
    %v1505 = vpack.c.b16 %v1097, %v1093
    %v1506 = vpack.c.b16 %v1102, %v1098
    %v1507 = vpack.c.b16 %v1103, %v1099
    %v1508 = vpack.c.b16 %v1104, %v1100
    %v1509 = vpack.c.b16 %v1105, %v1101
    %v1510 = vpack.c.b16 %v1110, %v1106
    %v1511 = vpack.c.b16 %v1111, %v1107
    %v1512 = vpack.c.b16 %v1112, %v1108
    %v1513 = vpack.c.b16 %v1113, %v1109
    %v1514 = vpack.c.b16 %v1118, %v1114
    %v1515 = vpack.c.b16 %v1119, %v1115
    %v1516 = vpack.c.b16 %v1120, %v1116
    %v1517 = vpack.c.b16 %v1121, %v1117
    %v1518 = vpack.c.b16 %v1126, %v1122
    %v1519 = vpack.c.b16 %v1127, %v1123
    %v1520 = vpack.c.b16 %v1128, %v1124
    %v1521 = vpack.c.b16 %v1129, %v1125
    %v1522 = vpack.c.b16 %v1134, %v1130
    %v1523 = vpack.c.b16 %v1135, %v1131
    %v1524 = vpack.c.b16 %v1136, %v1132
    %v1525 = vpack.c.b16 %v1137, %v1133
    %v1526 = vpack.c.b16 %v1142, %v1138
    %v1527 = vpack.c.b16 %v1143, %v1139
    %v1528 = vpack.c.b16 %v1144, %v1140
    %v1529 = vpack.c.b16 %v1145, %v1141
    %v1530 = vpack.c.b16 %v1150, %v1146
    %v1531 = vpack.c.b16 %v1151, %v1147
    %v1532 = vpack.c.b16 %v1152, %v1148
    %v1533 = vpack.c.b16 %v1153, %v1149
    %v1534 = vpack.c.b16 %v1158, %v1154
    %v1535 = vpack.c.b16 %v1159, %v1155
    %v1536 = vpack.c.b16 %v1160, %v1156
    %v1537 = vpack.c.b16 %v1161, %v1157
    %v1538 = vpack.c.b16 %v1166, %v1162
    %v1539 = vpack.c.b16 %v1167, %v1163
    %v1540 = vpack.c.b16 %v1168, %v1164
    %v1541 = vpack.c.b16 %v1169, %v1165
    %v1542 = vpack.c.b16 %v1174, %v1170
    %v1543 = vpack.c.b16 %v1175, %v1171
    %v1544 = vpack.c.b16 %v1176, %v1172
    %v1545 = vpack.c.b16 %v1177, %v1173
    %v1546 = vpack.c.b16 %v1182, %v1178
    %v1547 = vpack.c.b16 %v1183, %v1179
    %v1548 = vpack.c.b16 %v1184, %v1180
    %v1549 = vpack.c.b16 %v1185, %v1181
    %v1550 = vpack.c.b16 %v1190, %v1186
    %v1551 = vpack.c.b16 %v1191, %v1187
    %v1552 = vpack.c.b16 %v1192, %v1188
    %v1553 = vpack.c.b16 %v1193, %v1189
    %v1554 = vpack.c.b16 %v1198, %v1194
    %v1555 = vpack.c.b16 %v1199, %v1195
    %v1556 = vpack.c.b16 %v1200, %v1196
    %v1557 = vpack.c.b16 %v1201, %v1197
    %v1558 = vpack.c.b16 %v1206, %v1202
    %v1559 = vpack.c.b16 %v1207, %v1203
    %v1560 = vpack.c.b16 %v1208, %v1204
    %v1561 = vpack.c.b16 %v1209, %v1205
    %v1562 = vpack.c.b16 %v1214, %v1210
    %v1563 = vpack.c.b16 %v1215, %v1211
    %v1564 = vpack.c.b16 %v1216, %v1212
    %v1565 = vpack.c.b16 %v1217, %v1213
    %v1566 = vpack.c.b16 %v1222, %v1218
    %v1567 = vpack.c.b16 %v1223, %v1219
    %v1568 = vpack.c.b16 %v1224, %v1220
    %v1569 = vpack.c.b16 %v1225, %v1221
    %v1570 = vpack.c.b16 %v1230, %v1226
    %v1571 = vpack.c.b16 %v1231, %v1227
    %v1572 = vpack.c.b16 %v1232, %v1228
    %v1573 = vpack.c.b16 %v1233, %v1229
    %v1574 = vpack.c.b16 %v1238, %v1234
    %v1575 = vpack.c.b16 %v1239, %v1235
    %v1576 = vpack.c.b16 %v1240, %v1236
    %v1577 = vpack.c.b16 %v1241, %v1237
    %v1578 = vpack.c.b16 %v1246, %v1242
    %v1579 = vpack.c.b16 %v1247, %v1243
    %v1580 = vpack.c.b16 %v1248, %v1244
    %v1581 = vpack.c.b16 %v1249, %v1245
    %v1582 = vpack.c.b16 %v1254, %v1250
    %v1583 = vpack.c.b16 %v1255, %v1251
    %v1584 = vpack.c.b16 %v1256, %v1252
    %v1585 = vpack.c.b16 %v1257, %v1253
    %v1586 = vpack.c.b16 %v1262, %v1258
    %v1587 = vpack.c.b16 %v1263, %v1259
    %v1588 = vpack.c.b16 %v1264, %v1260
    %v1589 = vpack.c.b16 %v1265, %v1261
    %v1590 = vpack.c.b16 %v1270, %v1266
    %v1591 = vpack.c.b16 %v1271, %v1267
    %v1592 = vpack.c.b16 %v1272, %v1268
    %v1593 = vpack.c.b16 %v1273, %v1269
    %v1594 = vpack.c.b16 %v1278, %v1274
    %v1595 = vpack.c.b16 %v1279, %v1275
    %v1596 = vpack.c.b16 %v1280, %v1276
    %v1597 = vpack.c.b16 %v1281, %v1277
    %v1598 = vpack.c.b16 %v1286, %v1282
    %v1599 = vpack.c.b16 %v1287, %v1283
    %v1600 = vpack.c.b16 %v1288, %v1284
    %v1601 = vpack.c.b16 %v1289, %v1285
    %v1602 = vpack.c.b16 %v1294, %v1290
    %v1603 = vpack.c.b16 %v1295, %v1291
    %v1604 = vpack.c.b16 %v1296, %v1292
    %v1605 = vpack.c.b16 %v1297, %v1293
    %v1606 = vpack.c.b16 %v1302, %v1298
    %v1607 = vpack.c.b16 %v1303, %v1299
    %v1608 = vpack.c.b16 %v1304, %v1300
    %v1609 = vpack.c.b16 %v1305, %v1301
    %v1610 = vpack.c.b16 %v1310, %v1306
    %v1611 = vpack.c.b16 %v1311, %v1307
    %v1612 = vpack.c.b16 %v1312, %v1308
    %v1613 = vpack.c.b16 %v1313, %v1309
    %v1614 = vpack.c.b16 %v1318, %v1314
    %v1615 = vpack.c.b16 %v1319, %v1315
    %v1616 = vpack.c.b16 %v1320, %v1316
    %v1617 = vpack.c.b16 %v1321, %v1317
    %v1618 = vpack.c.b16 %v1326, %v1322
    %v1619 = vpack.c.b16 %v1327, %v1323
    %v1620 = vpack.c.b16 %v1328, %v1324
    %v1621 = vpack.c.b16 %v1329, %v1325
    %v1622 = vpack.c.b16 %v1334, %v1330
    %v1623 = vpack.c.b16 %v1335, %v1331
    %v1624 = vpack.c.b16 %v1336, %v1332
    %v1625 = vpack.c.b16 %v1337, %v1333
    %v1626 = vpack.c.b16 %v1342, %v1338
    %v1627 = vpack.c.b16 %v1343, %v1339
    %v1628 = vpack.c.b16 %v1344, %v1340
    %v1629 = vpack.c.b16 %v1345, %v1341
    %v1630 = vpack.c.b16 %v1350, %v1346
    %v1631 = vpack.c.b16 %v1351, %v1347
    %v1632 = vpack.c.b16 %v1352, %v1348
    %v1633 = vpack.c.b16 %v1353, %v1349
    %v1634 = vpack.c.b16 %v1358, %v1354
    %v1635 = vpack.c.b16 %v1359, %v1355
    %v1636 = vpack.c.b16 %v1360, %v1356
    %v1637 = vpack.c.b16 %v1361, %v1357
    %v1638 = vpack.c.b16 %v1366, %v1362
    %v1639 = vpack.c.b16 %v1367, %v1363
    %v1640 = vpack.c.b16 %v1368, %v1364
    %v1641 = vpack.c.b16 %v1369, %v1365
    %v1642 = vpack.c.b16 %v1374, %v1370
    %v1643 = vpack.c.b16 %v1375, %v1371
    %v1644 = vpack.c.b16 %v1376, %v1372
    %v1645 = vpack.c.b16 %v1377, %v1373
    %v1646 = vpack.c.b16 %v1382, %v1378
    %v1647 = vpack.c.b16 %v1383, %v1379
    %v1648 = vpack.c.b16 %v1384, %v1380
    %v1649 = vpack.c.b16 %v1385, %v1381
    %v1650 = vpack.c.b16 %v1390, %v1386
    %v1651 = vpack.c.b16 %v1391, %v1387
    %v1652 = vpack.c.b16 %v1392, %v1388
    %v1653 = vpack.c.b16 %v1393, %v1389
    %v1654 = vpack.c.b16 %v1398, %v1394
    %v1655 = vpack.c.b16 %v1399, %v1395
    %v1656 = vpack.c.b16 %v1400, %v1396
    %v1657 = vpack.c.b16 %v1401, %v1397
    %1914 = vmatpush.bf16.msra.mxu0 %v1430
    %1915 = vmatpush.bf16.msra.mxu0 %v1426
    %1916 = vmatpush.bf16.msra.mxu0 %v1422
    %1917 = vmatpush.bf16.msra.mxu0 %v1418
    %1918 = vmatpush.bf16.msra.mxu0 %v1414
    %1919 = vmatpush.bf16.msra.mxu0 %v1410
    %1920 = vmatpush.bf16.msra.mxu0 %v1406
    %1921 = vmatpush.bf16.msra.mxu0 %v1402
    %1922 = vmatmul.bf16.gmra.mxu0 %v360
    %v1923 = vpop.f32.mrf.mxu0
    %v1924 = vadd.f32 %v626, %v1923
    %v1925 = vpop.f32.mrf.mxu0
    %1926 = vdwg.mxu0
    %1927 = vmatpush.bf16.msra.mxu0 %v1462
    %1928 = vmatpush.bf16.msra.mxu0 %v1458
    %1929 = vmatpush.bf16.msra.mxu0 %v1454
    %1930 = vmatpush.bf16.msra.mxu0 %v1450
    %1931 = vmatpush.bf16.msra.mxu0 %v1446
    %1932 = vmatpush.bf16.msra.mxu0 %v1442
    %1933 = vmatpush.bf16.msra.mxu0 %v1438
    %1934 = vmatpush.bf16.msra.mxu0 %v1434
    %1935 = vmatmul.bf16.gmra.mxu0 %v361
    %v1936 = vpop.f32.mrf.mxu0
    %v1937 = vadd.f32 %v1924, %v1936
    %v1938 = vpop.f32.mrf.mxu0
    %1939 = vdwg.mxu0
    %1940 = vmatpush.bf16.msra.mxu0 %v1494
    %1941 = vmatpush.bf16.msra.mxu0 %v1490
    %1942 = vmatpush.bf16.msra.mxu0 %v1486
    %1943 = vmatpush.bf16.msra.mxu0 %v1482
    %1944 = vmatpush.bf16.msra.mxu0 %v1478
    %1945 = vmatpush.bf16.msra.mxu0 %v1474
    %1946 = vmatpush.bf16.msra.mxu0 %v1470
    %1947 = vmatpush.bf16.msra.mxu0 %v1466
    %1948 = vmatmul.bf16.gmra.mxu0 %v362
    %v1949 = vpop.f32.mrf.mxu0
    %v1950 = vadd.f32 %v1937, %v1949
    %v1951 = vpop.f32.mrf.mxu0
    %1952 = vdwg.mxu0
    %1953 = vmatpush.bf16.msra.mxu0 %v1526
    %1954 = vmatpush.bf16.msra.mxu0 %v1522
    %1955 = vmatpush.bf16.msra.mxu0 %v1518
    %1956 = vmatpush.bf16.msra.mxu0 %v1514
    %1957 = vmatpush.bf16.msra.mxu0 %v1510
    %1958 = vmatpush.bf16.msra.mxu0 %v1506
    %1959 = vmatpush.bf16.msra.mxu0 %v1502
    %1960 = vmatpush.bf16.msra.mxu0 %v1498
    %1961 = vmatmul.bf16.gmra.mxu0 %v363
    %v1962 = vpop.f32.mrf.mxu0
    %v1963 = vadd.f32 %v1950, %v1962
    %v1964 = vpop.f32.mrf.mxu0
    %1965 = vdwg.mxu0
    %1966 = vmatpush.bf16.msra.mxu0 %v1558
    %1967 = vmatpush.bf16.msra.mxu0 %v1554
    %1968 = vmatpush.bf16.msra.mxu0 %v1550
    %1969 = vmatpush.bf16.msra.mxu0 %v1546
    %1970 = vmatpush.bf16.msra.mxu0 %v1542
    %1971 = vmatpush.bf16.msra.mxu0 %v1538
    %1972 = vmatpush.bf16.msra.mxu0 %v1534
    %1973 = vmatpush.bf16.msra.mxu0 %v1530
    %1974 = vmatmul.bf16.gmra.mxu0 %v364
    %v1975 = vpop.f32.mrf.mxu0
    %v1976 = vadd.f32 %v1963, %v1975
    %v1977 = vpop.f32.mrf.mxu0
    %1978 = vdwg.mxu0
    %1979 = vmatpush.bf16.msra.mxu0 %v1590
    %1980 = vmatpush.bf16.msra.mxu0 %v1586
    %1981 = vmatpush.bf16.msra.mxu0 %v1582
    %1982 = vmatpush.bf16.msra.mxu0 %v1578
    %1983 = vmatpush.bf16.msra.mxu0 %v1574
    %1984 = vmatpush.bf16.msra.mxu0 %v1570
    %1985 = vmatpush.bf16.msra.mxu0 %v1566
    %1986 = vmatpush.bf16.msra.mxu0 %v1562
    %1987 = vmatmul.bf16.gmra.mxu0 %v365
    %v1988 = vpop.f32.mrf.mxu0
    %v1989 = vadd.f32 %v1976, %v1988
    %v1990 = vpop.f32.mrf.mxu0
    %1991 = vdwg.mxu0
    %1992 = vmatpush.bf16.msra.mxu0 %v1622
    %1993 = vmatpush.bf16.msra.mxu0 %v1618
    %1994 = vmatpush.bf16.msra.mxu0 %v1614
    %1995 = vmatpush.bf16.msra.mxu0 %v1610
    %1996 = vmatpush.bf16.msra.mxu0 %v1606
    %1997 = vmatpush.bf16.msra.mxu0 %v1602
    %1998 = vmatpush.bf16.msra.mxu0 %v1598
    %1999 = vmatpush.bf16.msra.mxu0 %v1594
    %2000 = vmatmul.bf16.gmra.mxu0 %v366
    %v2001 = vpop.f32.mrf.mxu0
    %v2002 = vadd.f32 %v1989, %v2001
    %v2003 = vpop.f32.mrf.mxu0
    %2004 = vdwg.mxu0
    %2005 = vmatpush.bf16.msra.mxu0 %v1654
    %2006 = vmatpush.bf16.msra.mxu0 %v1650
    %2007 = vmatpush.bf16.msra.mxu0 %v1646
    %2008 = vmatpush.bf16.msra.mxu0 %v1642
    %2009 = vmatpush.bf16.msra.mxu0 %v1638
    %2010 = vmatpush.bf16.msra.mxu0 %v1634
    %2011 = vmatpush.bf16.msra.mxu0 %v1630
    %2012 = vmatpush.bf16.msra.mxu0 %v1626
    %2013 = vmatmul.bf16.gmra.mxu0 %v367
    %v2014 = vpop.f32.mrf.mxu0
    %v2015 = vadd.f32 %v2002, %v2014
    %v2016 = vpop.f32.mrf.mxu0
    %2017 = vdwg.mxu0
    %2018 = vmatpush.bf16.msra.mxu0 %v1431
    %2019 = vmatpush.bf16.msra.mxu0 %v1427
    %2020 = vmatpush.bf16.msra.mxu0 %v1423
    %2021 = vmatpush.bf16.msra.mxu0 %v1419
    %2022 = vmatpush.bf16.msra.mxu0 %v1415
    %2023 = vmatpush.bf16.msra.mxu0 %v1411
    %2024 = vmatpush.bf16.msra.mxu0 %v1407
    %2025 = vmatpush.bf16.msra.mxu0 %v1403
    %2026 = vmatmul.bf16.gmra.mxu0 %v360
    %v2027 = vpop.f32.mrf.mxu0
    %v2028 = vadd.f32 %v627, %v2027
    %v2029 = vpop.f32.mrf.mxu0
    %2030 = vdwg.mxu0
    %2031 = vmatpush.bf16.msra.mxu0 %v1463
    %2032 = vmatpush.bf16.msra.mxu0 %v1459
    %2033 = vmatpush.bf16.msra.mxu0 %v1455
    %2034 = vmatpush.bf16.msra.mxu0 %v1451
    %2035 = vmatpush.bf16.msra.mxu0 %v1447
    %2036 = vmatpush.bf16.msra.mxu0 %v1443
    %2037 = vmatpush.bf16.msra.mxu0 %v1439
    %2038 = vmatpush.bf16.msra.mxu0 %v1435
    %2039 = vmatmul.bf16.gmra.mxu0 %v361
    %v2040 = vpop.f32.mrf.mxu0
    %v2041 = vadd.f32 %v2028, %v2040
    %v2042 = vpop.f32.mrf.mxu0
    %2043 = vdwg.mxu0
    %2044 = vmatpush.bf16.msra.mxu0 %v1495
    %2045 = vmatpush.bf16.msra.mxu0 %v1491
    %2046 = vmatpush.bf16.msra.mxu0 %v1487
    %2047 = vmatpush.bf16.msra.mxu0 %v1483
    %2048 = vmatpush.bf16.msra.mxu0 %v1479
    %2049 = vmatpush.bf16.msra.mxu0 %v1475
    %2050 = vmatpush.bf16.msra.mxu0 %v1471
    %2051 = vmatpush.bf16.msra.mxu0 %v1467
    %2052 = vmatmul.bf16.gmra.mxu0 %v362
    %v2053 = vpop.f32.mrf.mxu0
    %v2054 = vadd.f32 %v2041, %v2053
    %v2055 = vpop.f32.mrf.mxu0
    %2056 = vdwg.mxu0
    %2057 = vmatpush.bf16.msra.mxu0 %v1527
    %2058 = vmatpush.bf16.msra.mxu0 %v1523
    %2059 = vmatpush.bf16.msra.mxu0 %v1519
    %2060 = vmatpush.bf16.msra.mxu0 %v1515
    %2061 = vmatpush.bf16.msra.mxu0 %v1511
    %2062 = vmatpush.bf16.msra.mxu0 %v1507
    %2063 = vmatpush.bf16.msra.mxu0 %v1503
    %2064 = vmatpush.bf16.msra.mxu0 %v1499
    %2065 = vmatmul.bf16.gmra.mxu0 %v363
    %v2066 = vpop.f32.mrf.mxu0
    %v2067 = vadd.f32 %v2054, %v2066
    %v2068 = vpop.f32.mrf.mxu0
    %2069 = vdwg.mxu0
    %2070 = vmatpush.bf16.msra.mxu0 %v1559
    %2071 = vmatpush.bf16.msra.mxu0 %v1555
    %2072 = vmatpush.bf16.msra.mxu0 %v1551
    %2073 = vmatpush.bf16.msra.mxu0 %v1547
    %2074 = vmatpush.bf16.msra.mxu0 %v1543
    %2075 = vmatpush.bf16.msra.mxu0 %v1539
    %2076 = vmatpush.bf16.msra.mxu0 %v1535
    %2077 = vmatpush.bf16.msra.mxu0 %v1531
    %2078 = vmatmul.bf16.gmra.mxu0 %v364
    %v2079 = vpop.f32.mrf.mxu0
    %v2080 = vadd.f32 %v2067, %v2079
    %v2081 = vpop.f32.mrf.mxu0
    %2082 = vdwg.mxu0
    %2083 = vmatpush.bf16.msra.mxu0 %v1591
    %2084 = vmatpush.bf16.msra.mxu0 %v1587
    %2085 = vmatpush.bf16.msra.mxu0 %v1583
    %2086 = vmatpush.bf16.msra.mxu0 %v1579
    %2087 = vmatpush.bf16.msra.mxu0 %v1575
    %2088 = vmatpush.bf16.msra.mxu0 %v1571
    %2089 = vmatpush.bf16.msra.mxu0 %v1567
    %2090 = vmatpush.bf16.msra.mxu0 %v1563
    %2091 = vmatmul.bf16.gmra.mxu0 %v365
    %v2092 = vpop.f32.mrf.mxu0
    %v2093 = vadd.f32 %v2080, %v2092
    %v2094 = vpop.f32.mrf.mxu0
    %2095 = vdwg.mxu0
    %2096 = vmatpush.bf16.msra.mxu0 %v1623
    %2097 = vmatpush.bf16.msra.mxu0 %v1619
    %2098 = vmatpush.bf16.msra.mxu0 %v1615
    %2099 = vmatpush.bf16.msra.mxu0 %v1611
    %2100 = vmatpush.bf16.msra.mxu0 %v1607
    %2101 = vmatpush.bf16.msra.mxu0 %v1603
    %2102 = vmatpush.bf16.msra.mxu0 %v1599
    %2103 = vmatpush.bf16.msra.mxu0 %v1595
    %2104 = vmatmul.bf16.gmra.mxu0 %v366
    %v2105 = vpop.f32.mrf.mxu0
    %v2106 = vadd.f32 %v2093, %v2105
    %v2107 = vpop.f32.mrf.mxu0
    %2108 = vdwg.mxu0
    %2109 = vmatpush.bf16.msra.mxu0 %v1655
    %2110 = vmatpush.bf16.msra.mxu0 %v1651
    %2111 = vmatpush.bf16.msra.mxu0 %v1647
    %2112 = vmatpush.bf16.msra.mxu0 %v1643
    %2113 = vmatpush.bf16.msra.mxu0 %v1639
    %2114 = vmatpush.bf16.msra.mxu0 %v1635
    %2115 = vmatpush.bf16.msra.mxu0 %v1631
    %2116 = vmatpush.bf16.msra.mxu0 %v1627
    %2117 = vmatmul.bf16.gmra.mxu0 %v367
    %v2118 = vpop.f32.mrf.mxu0
    %v2119 = vadd.f32 %v2106, %v2118
    %v2120 = vpop.f32.mrf.mxu0
    %2121 = vdwg.mxu0
    %2122 = vmatpush.bf16.msra.mxu0 %v1432
    %2123 = vmatpush.bf16.msra.mxu0 %v1428
    %2124 = vmatpush.bf16.msra.mxu0 %v1424
    %2125 = vmatpush.bf16.msra.mxu0 %v1420
    %2126 = vmatpush.bf16.msra.mxu0 %v1416
    %2127 = vmatpush.bf16.msra.mxu0 %v1412
    %2128 = vmatpush.bf16.msra.mxu0 %v1408
    %2129 = vmatpush.bf16.msra.mxu0 %v1404
    %2130 = vmatmul.bf16.gmra.mxu0 %v360
    %v2131 = vpop.f32.mrf.mxu0
    %v2132 = vadd.f32 %v628, %v2131
    %v2133 = vpop.f32.mrf.mxu0
    %2134 = vdwg.mxu0
    %2135 = vmatpush.bf16.msra.mxu0 %v1464
    %2136 = vmatpush.bf16.msra.mxu0 %v1460
    %2137 = vmatpush.bf16.msra.mxu0 %v1456
    %2138 = vmatpush.bf16.msra.mxu0 %v1452
    %2139 = vmatpush.bf16.msra.mxu0 %v1448
    %2140 = vmatpush.bf16.msra.mxu0 %v1444
    %2141 = vmatpush.bf16.msra.mxu0 %v1440
    %2142 = vmatpush.bf16.msra.mxu0 %v1436
    %2143 = vmatmul.bf16.gmra.mxu0 %v361
    %v2144 = vpop.f32.mrf.mxu0
    %v2145 = vadd.f32 %v2132, %v2144
    %v2146 = vpop.f32.mrf.mxu0
    %2147 = vdwg.mxu0
    %2148 = vmatpush.bf16.msra.mxu0 %v1496
    %2149 = vmatpush.bf16.msra.mxu0 %v1492
    %2150 = vmatpush.bf16.msra.mxu0 %v1488
    %2151 = vmatpush.bf16.msra.mxu0 %v1484
    %2152 = vmatpush.bf16.msra.mxu0 %v1480
    %2153 = vmatpush.bf16.msra.mxu0 %v1476
    %2154 = vmatpush.bf16.msra.mxu0 %v1472
    %2155 = vmatpush.bf16.msra.mxu0 %v1468
    %2156 = vmatmul.bf16.gmra.mxu0 %v362
    %v2157 = vpop.f32.mrf.mxu0
    %v2158 = vadd.f32 %v2145, %v2157
    %v2159 = vpop.f32.mrf.mxu0
    %2160 = vdwg.mxu0
    %2161 = vmatpush.bf16.msra.mxu0 %v1528
    %2162 = vmatpush.bf16.msra.mxu0 %v1524
    %2163 = vmatpush.bf16.msra.mxu0 %v1520
    %2164 = vmatpush.bf16.msra.mxu0 %v1516
    %2165 = vmatpush.bf16.msra.mxu0 %v1512
    %2166 = vmatpush.bf16.msra.mxu0 %v1508
    %2167 = vmatpush.bf16.msra.mxu0 %v1504
    %2168 = vmatpush.bf16.msra.mxu0 %v1500
    %2169 = vmatmul.bf16.gmra.mxu0 %v363
    %v2170 = vpop.f32.mrf.mxu0
    %v2171 = vadd.f32 %v2158, %v2170
    %v2172 = vpop.f32.mrf.mxu0
    %2173 = vdwg.mxu0
    %2174 = vmatpush.bf16.msra.mxu0 %v1560
    %2175 = vmatpush.bf16.msra.mxu0 %v1556
    %2176 = vmatpush.bf16.msra.mxu0 %v1552
    %2177 = vmatpush.bf16.msra.mxu0 %v1548
    %2178 = vmatpush.bf16.msra.mxu0 %v1544
    %2179 = vmatpush.bf16.msra.mxu0 %v1540
    %2180 = vmatpush.bf16.msra.mxu0 %v1536
    %2181 = vmatpush.bf16.msra.mxu0 %v1532
    %2182 = vmatmul.bf16.gmra.mxu0 %v364
    %v2183 = vpop.f32.mrf.mxu0
    %v2184 = vadd.f32 %v2171, %v2183
    %v2185 = vpop.f32.mrf.mxu0
    %2186 = vdwg.mxu0
    %2187 = vmatpush.bf16.msra.mxu0 %v1592
    %2188 = vmatpush.bf16.msra.mxu0 %v1588
    %2189 = vmatpush.bf16.msra.mxu0 %v1584
    %2190 = vmatpush.bf16.msra.mxu0 %v1580
    %2191 = vmatpush.bf16.msra.mxu0 %v1576
    %2192 = vmatpush.bf16.msra.mxu0 %v1572
    %2193 = vmatpush.bf16.msra.mxu0 %v1568
    %2194 = vmatpush.bf16.msra.mxu0 %v1564
    %2195 = vmatmul.bf16.gmra.mxu0 %v365
    %v2196 = vpop.f32.mrf.mxu0
    %v2197 = vadd.f32 %v2184, %v2196
    %v2198 = vpop.f32.mrf.mxu0
    %2199 = vdwg.mxu0
    %2200 = vmatpush.bf16.msra.mxu0 %v1624
    %2201 = vmatpush.bf16.msra.mxu0 %v1620
    %2202 = vmatpush.bf16.msra.mxu0 %v1616
    %2203 = vmatpush.bf16.msra.mxu0 %v1612
    %2204 = vmatpush.bf16.msra.mxu0 %v1608
    %2205 = vmatpush.bf16.msra.mxu0 %v1604
    %2206 = vmatpush.bf16.msra.mxu0 %v1600
    %2207 = vmatpush.bf16.msra.mxu0 %v1596
    %2208 = vmatmul.bf16.gmra.mxu0 %v366
    %v2209 = vpop.f32.mrf.mxu0
    %v2210 = vadd.f32 %v2197, %v2209
    %v2211 = vpop.f32.mrf.mxu0
    %2212 = vdwg.mxu0
    %2213 = vmatpush.bf16.msra.mxu0 %v1656
    %2214 = vmatpush.bf16.msra.mxu0 %v1652
    %2215 = vmatpush.bf16.msra.mxu0 %v1648
    %2216 = vmatpush.bf16.msra.mxu0 %v1644
    %2217 = vmatpush.bf16.msra.mxu0 %v1640
    %2218 = vmatpush.bf16.msra.mxu0 %v1636
    %2219 = vmatpush.bf16.msra.mxu0 %v1632
    %2220 = vmatpush.bf16.msra.mxu0 %v1628
    %2221 = vmatmul.bf16.gmra.mxu0 %v367
    %v2222 = vpop.f32.mrf.mxu0
    %v2223 = vadd.f32 %v2210, %v2222
    %v2224 = vpop.f32.mrf.mxu0
    %2225 = vdwg.mxu0
    %2226 = vmatpush.bf16.msra.mxu0 %v1433
    %2227 = vmatpush.bf16.msra.mxu0 %v1429
    %2228 = vmatpush.bf16.msra.mxu0 %v1425
    %2229 = vmatpush.bf16.msra.mxu0 %v1421
    %2230 = vmatpush.bf16.msra.mxu0 %v1417
    %2231 = vmatpush.bf16.msra.mxu0 %v1413
    %2232 = vmatpush.bf16.msra.mxu0 %v1409
    %2233 = vmatpush.bf16.msra.mxu0 %v1405
    %2234 = vmatmul.bf16.gmra.mxu0 %v360
    %v2235 = vpop.f32.mrf.mxu0
    %v2236 = vadd.f32 %v629, %v2235
    %v2237 = vpop.f32.mrf.mxu0
    %2238 = vdwg.mxu0
    %2239 = vmatpush.bf16.msra.mxu0 %v1465
    %2240 = vmatpush.bf16.msra.mxu0 %v1461
    %2241 = vmatpush.bf16.msra.mxu0 %v1457
    %2242 = vmatpush.bf16.msra.mxu0 %v1453
    %2243 = vmatpush.bf16.msra.mxu0 %v1449
    %2244 = vmatpush.bf16.msra.mxu0 %v1445
    %2245 = vmatpush.bf16.msra.mxu0 %v1441
    %2246 = vmatpush.bf16.msra.mxu0 %v1437
    %2247 = vmatmul.bf16.gmra.mxu0 %v361
    %v2248 = vpop.f32.mrf.mxu0
    %v2249 = vadd.f32 %v2236, %v2248
    %v2250 = vpop.f32.mrf.mxu0
    %2251 = vdwg.mxu0
    %2252 = vmatpush.bf16.msra.mxu0 %v1497
    %2253 = vmatpush.bf16.msra.mxu0 %v1493
    %2254 = vmatpush.bf16.msra.mxu0 %v1489
    %2255 = vmatpush.bf16.msra.mxu0 %v1485
    %2256 = vmatpush.bf16.msra.mxu0 %v1481
    %2257 = vmatpush.bf16.msra.mxu0 %v1477
    %2258 = vmatpush.bf16.msra.mxu0 %v1473
    %2259 = vmatpush.bf16.msra.mxu0 %v1469
    %2260 = vmatmul.bf16.gmra.mxu0 %v362
    %v2261 = vpop.f32.mrf.mxu0
    %v2262 = vadd.f32 %v2249, %v2261
    %v2263 = vpop.f32.mrf.mxu0
    %2264 = vdwg.mxu0
    %2265 = vmatpush.bf16.msra.mxu0 %v1529
    %2266 = vmatpush.bf16.msra.mxu0 %v1525
    %2267 = vmatpush.bf16.msra.mxu0 %v1521
    %2268 = vmatpush.bf16.msra.mxu0 %v1517
    %2269 = vmatpush.bf16.msra.mxu0 %v1513
    %2270 = vmatpush.bf16.msra.mxu0 %v1509
    %2271 = vmatpush.bf16.msra.mxu0 %v1505
    %2272 = vmatpush.bf16.msra.mxu0 %v1501
    %2273 = vmatmul.bf16.gmra.mxu0 %v363
    %v2274 = vpop.f32.mrf.mxu0
    %v2275 = vadd.f32 %v2262, %v2274
    %v2276 = vpop.f32.mrf.mxu0
    %2277 = vdwg.mxu0
    %2278 = vmatpush.bf16.msra.mxu0 %v1561
    %2279 = vmatpush.bf16.msra.mxu0 %v1557
    %2280 = vmatpush.bf16.msra.mxu0 %v1553
    %2281 = vmatpush.bf16.msra.mxu0 %v1549
    %2282 = vmatpush.bf16.msra.mxu0 %v1545
    %2283 = vmatpush.bf16.msra.mxu0 %v1541
    %2284 = vmatpush.bf16.msra.mxu0 %v1537
    %2285 = vmatpush.bf16.msra.mxu0 %v1533
    %2286 = vmatmul.bf16.gmra.mxu0 %v364
    %v2287 = vpop.f32.mrf.mxu0
    %v2288 = vadd.f32 %v2275, %v2287
    %v2289 = vpop.f32.mrf.mxu0
    %2290 = vdwg.mxu0
    %2291 = vmatpush.bf16.msra.mxu0 %v1593
    %2292 = vmatpush.bf16.msra.mxu0 %v1589
    %2293 = vmatpush.bf16.msra.mxu0 %v1585
    %2294 = vmatpush.bf16.msra.mxu0 %v1581
    %2295 = vmatpush.bf16.msra.mxu0 %v1577
    %2296 = vmatpush.bf16.msra.mxu0 %v1573
    %2297 = vmatpush.bf16.msra.mxu0 %v1569
    %2298 = vmatpush.bf16.msra.mxu0 %v1565
    %2299 = vmatmul.bf16.gmra.mxu0 %v365
    %v2300 = vpop.f32.mrf.mxu0
    %v2301 = vadd.f32 %v2288, %v2300
    %v2302 = vpop.f32.mrf.mxu0
    %2303 = vdwg.mxu0
    %2304 = vmatpush.bf16.msra.mxu0 %v1625
    %2305 = vmatpush.bf16.msra.mxu0 %v1621
    %2306 = vmatpush.bf16.msra.mxu0 %v1617
    %2307 = vmatpush.bf16.msra.mxu0 %v1613
    %2308 = vmatpush.bf16.msra.mxu0 %v1609
    %2309 = vmatpush.bf16.msra.mxu0 %v1605
    %2310 = vmatpush.bf16.msra.mxu0 %v1601
    %2311 = vmatpush.bf16.msra.mxu0 %v1597
    %2312 = vmatmul.bf16.gmra.mxu0 %v366
    %v2313 = vpop.f32.mrf.mxu0
    %v2314 = vadd.f32 %v2301, %v2313
    %v2315 = vpop.f32.mrf.mxu0
    %2316 = vdwg.mxu0
    %2317 = vmatpush.bf16.msra.mxu0 %v1657
    %2318 = vmatpush.bf16.msra.mxu0 %v1653
    %2319 = vmatpush.bf16.msra.mxu0 %v1649
    %2320 = vmatpush.bf16.msra.mxu0 %v1645
    %2321 = vmatpush.bf16.msra.mxu0 %v1641
    %2322 = vmatpush.bf16.msra.mxu0 %v1637
    %2323 = vmatpush.bf16.msra.mxu0 %v1633
    %2324 = vmatpush.bf16.msra.mxu0 %v1629
    %2325 = vmatmul.bf16.gmra.mxu0 %v367
    %v2326 = vpop.f32.mrf.mxu0
    %v2327 = vadd.f32 %v2314, %v2326
    %v2328 = vpop.f32.mrf.mxu0
    %2329 = vdwg.mxu0
    %v2330 = vmax.f32 %v2015, 0.0
    %v2331 = vmax.f32 %v2119, 0.0
    %v2332 = vmax.f32 %v2223, 0.0
    %v2333 = vmax.f32 %v2327, 0.0
    %v2334 = vpack.c.bf16 %v2330, %v2330
    %v2335 = vpack.c.bf16 %v2331, %v2331
    %v2336 = vpack.c.bf16 %v2332, %v2332
    %v2337 = vpack.c.bf16 %v2333, %v2333
    %v2338 = vld [vmem:[#allocation11] sm:$0xff]
    %v2339 = vld [vmem:[#allocation11 + $0x8] sm:$0xff]
    %v2340 = vld [vmem:[#allocation11 + $0x10] sm:$0xff]
    %v2341 = vld [vmem:[#allocation11 + $0x18] sm:$0xff]
    %v2342 = vld [vmem:[#allocation11 + $0x20] sm:$0xff]
    %v2343 = vld [vmem:[#allocation11 + $0x28] sm:$0xff]
    %v2344 = vld [vmem:[#allocation11 + $0x30] sm:$0xff]
    %v2345 = vld [vmem:[#allocation11 + $0x38] sm:$0xff]
    %v2346 = vld [vmem:[#allocation11 + $0x40] sm:$0xff]
    %v2347 = vld [vmem:[#allocation11 + $0x48] sm:$0xff]
    %v2348 = vld [vmem:[#allocation11 + $0x50] sm:$0xff]
    %v2349 = vld [vmem:[#allocation11 + $0x58] sm:$0xff]
    %v2350 = vld [vmem:[#allocation11 + $0x60] sm:$0xff]
    %v2351 = vld [vmem:[#allocation11 + $0x68] sm:$0xff]
    %v2352 = vld [vmem:[#allocation11 + $0x70] sm:$0xff]
    %v2353 = vld [vmem:[#allocation11 + $0x78] sm:$0xff]
    %v2354 = vld [vmem:[#allocation11 + $0x80] sm:$0xff]
    %v2355 = vld [vmem:[#allocation11 + $0x88] sm:$0xff]
    %v2356 = vld [vmem:[#allocation11 + $0x90] sm:$0xff]
    %v2357 = vld [vmem:[#allocation11 + $0x98] sm:$0xff]
    %v2358 = vld [vmem:[#allocation11 + $0xa0] sm:$0xff]
    %v2359 = vld [vmem:[#allocation11 + $0xa8] sm:$0xff]
    %v2360 = vld [vmem:[#allocation11 + $0xb0] sm:$0xff]
    %v2361 = vld [vmem:[#allocation11 + $0xb8] sm:$0xff]
    %v2362 = vld [vmem:[#allocation11 + $0xc0] sm:$0xff]
    %v2363 = vld [vmem:[#allocation11 + $0xc8] sm:$0xff]
    %v2364 = vld [vmem:[#allocation11 + $0xd0] sm:$0xff]
    %v2365 = vld [vmem:[#allocation11 + $0xd8] sm:$0xff]
    %v2366 = vld [vmem:[#allocation11 + $0xe0] sm:$0xff]
    %v2367 = vld [vmem:[#allocation11 + $0xe8] sm:$0xff]
    %v2368 = vld [vmem:[#allocation11 + $0xf0] sm:$0xff]
    %v2369 = vld [vmem:[#allocation11 + $0xf8] sm:$0xff]
    %v2370 = vld [vmem:[#allocation11 + $0x100] sm:$0xff]
    %v2371 = vld [vmem:[#allocation11 + $0x108] sm:$0xff]
    %v2372 = vld [vmem:[#allocation11 + $0x110] sm:$0xff]
    %v2373 = vld [vmem:[#allocation11 + $0x118] sm:$0xff]
    %v2374 = vld [vmem:[#allocation11 + $0x120] sm:$0xff]
    %v2375 = vld [vmem:[#allocation11 + $0x128] sm:$0xff]
    %v2376 = vld [vmem:[#allocation11 + $0x130] sm:$0xff]
    %v2377 = vld [vmem:[#allocation11 + $0x138] sm:$0xff]
    %v2378 = vld [vmem:[#allocation11 + $0x140] sm:$0xff]
    %v2379 = vld [vmem:[#allocation11 + $0x148] sm:$0xff]
    %v2380 = vld [vmem:[#allocation11 + $0x150] sm:$0xff]
    %v2381 = vld [vmem:[#allocation11 + $0x158] sm:$0xff]
    %v2382 = vld [vmem:[#allocation11 + $0x160] sm:$0xff]
    %v2383 = vld [vmem:[#allocation11 + $0x168] sm:$0xff]
    %v2384 = vld [vmem:[#allocation11 + $0x170] sm:$0xff]
    %v2385 = vld [vmem:[#allocation11 + $0x178] sm:$0xff]
    %v2386 = vld [vmem:[#allocation11 + $0x180] sm:$0xff]
    %v2387 = vld [vmem:[#allocation11 + $0x188] sm:$0xff]
    %v2388 = vld [vmem:[#allocation11 + $0x190] sm:$0xff]
    %v2389 = vld [vmem:[#allocation11 + $0x198] sm:$0xff]
    %v2390 = vld [vmem:[#allocation11 + $0x1a0] sm:$0xff]
    %v2391 = vld [vmem:[#allocation11 + $0x1a8] sm:$0xff]
    %v2392 = vld [vmem:[#allocation11 + $0x1b0] sm:$0xff]
    %v2393 = vld [vmem:[#allocation11 + $0x1b8] sm:$0xff]
    %v2394 = vld [vmem:[#allocation11 + $0x1c0] sm:$0xff]
    %v2395 = vld [vmem:[#allocation11 + $0x1c8] sm:$0xff]
    %v2396 = vld [vmem:[#allocation11 + $0x1d0] sm:$0xff]
    %v2397 = vld [vmem:[#allocation11 + $0x1d8] sm:$0xff]
    %v2398 = vld [vmem:[#allocation11 + $0x1e0] sm:$0xff]
    %v2399 = vld [vmem:[#allocation11 + $0x1e8] sm:$0xff]
    %v2400 = vld [vmem:[#allocation11 + $0x1f0] sm:$0xff]
    %v2401 = vld [vmem:[#allocation11 + $0x1f8] sm:$0xff]
    %v2402 = vld [vmem:[#allocation11 + $0x200] sm:$0xff]
    %v2403 = vld [vmem:[#allocation11 + $0x208] sm:$0xff]
    %v2404 = vld [vmem:[#allocation11 + $0x210] sm:$0xff]
    %v2405 = vld [vmem:[#allocation11 + $0x218] sm:$0xff]
    %v2406 = vld [vmem:[#allocation11 + $0x220] sm:$0xff]
    %v2407 = vld [vmem:[#allocation11 + $0x228] sm:$0xff]
    %v2408 = vld [vmem:[#allocation11 + $0x230] sm:$0xff]
    %v2409 = vld [vmem:[#allocation11 + $0x238] sm:$0xff]
    %v2410 = vld [vmem:[#allocation11 + $0x240] sm:$0xff]
    %v2411 = vld [vmem:[#allocation11 + $0x248] sm:$0xff]
    %v2412 = vld [vmem:[#allocation11 + $0x250] sm:$0xff]
    %v2413 = vld [vmem:[#allocation11 + $0x258] sm:$0xff]
    %v2414 = vld [vmem:[#allocation11 + $0x260] sm:$0xff]
    %v2415 = vld [vmem:[#allocation11 + $0x268] sm:$0xff]
    %v2416 = vld [vmem:[#allocation11 + $0x270] sm:$0xff]
    %v2417 = vld [vmem:[#allocation11 + $0x278] sm:$0xff]
    %v2418 = vld [vmem:[#allocation11 + $0x280] sm:$0xff]
    %v2419 = vld [vmem:[#allocation11 + $0x288] sm:$0xff]
    %v2420 = vld [vmem:[#allocation11 + $0x290] sm:$0xff]
    %v2421 = vld [vmem:[#allocation11 + $0x298] sm:$0xff]
    %v2422 = vld [vmem:[#allocation11 + $0x2a0] sm:$0xff]
    %v2423 = vld [vmem:[#allocation11 + $0x2a8] sm:$0xff]
    %v2424 = vld [vmem:[#allocation11 + $0x2b0] sm:$0xff]
    %v2425 = vld [vmem:[#allocation11 + $0x2b8] sm:$0xff]
    %v2426 = vld [vmem:[#allocation11 + $0x2c0] sm:$0xff]
    %v2427 = vld [vmem:[#allocation11 + $0x2c8] sm:$0xff]
    %v2428 = vld [vmem:[#allocation11 + $0x2d0] sm:$0xff]
    %v2429 = vld [vmem:[#allocation11 + $0x2d8] sm:$0xff]
    %v2430 = vld [vmem:[#allocation11 + $0x2e0] sm:$0xff]
    %v2431 = vld [vmem:[#allocation11 + $0x2e8] sm:$0xff]
    %v2432 = vld [vmem:[#allocation11 + $0x2f0] sm:$0xff]
    %v2433 = vld [vmem:[#allocation11 + $0x2f8] sm:$0xff]
    %v2434 = vld [vmem:[#allocation11 + $0x300] sm:$0xff]
    %v2435 = vld [vmem:[#allocation11 + $0x308] sm:$0xff]
    %v2436 = vld [vmem:[#allocation11 + $0x310] sm:$0xff]
    %v2437 = vld [vmem:[#allocation11 + $0x318] sm:$0xff]
    %v2438 = vld [vmem:[#allocation11 + $0x320] sm:$0xff]
    %v2439 = vld [vmem:[#allocation11 + $0x328] sm:$0xff]
    %v2440 = vld [vmem:[#allocation11 + $0x330] sm:$0xff]
    %v2441 = vld [vmem:[#allocation11 + $0x338] sm:$0xff]
    %v2442 = vld [vmem:[#allocation11 + $0x340] sm:$0xff]
    %v2443 = vld [vmem:[#allocation11 + $0x348] sm:$0xff]
    %v2444 = vld [vmem:[#allocation11 + $0x350] sm:$0xff]
    %v2445 = vld [vmem:[#allocation11 + $0x358] sm:$0xff]
    %v2446 = vld [vmem:[#allocation11 + $0x360] sm:$0xff]
    %v2447 = vld [vmem:[#allocation11 + $0x368] sm:$0xff]
    %v2448 = vld [vmem:[#allocation11 + $0x370] sm:$0xff]
    %v2449 = vld [vmem:[#allocation11 + $0x378] sm:$0xff]
    %v2450 = vld [vmem:[#allocation11 + $0x380] sm:$0xff]
    %v2451 = vld [vmem:[#allocation11 + $0x388] sm:$0xff]
    %v2452 = vld [vmem:[#allocation11 + $0x390] sm:$0xff]
    %v2453 = vld [vmem:[#allocation11 + $0x398] sm:$0xff]
    %v2454 = vld [vmem:[#allocation11 + $0x3a0] sm:$0xff]
    %v2455 = vld [vmem:[#allocation11 + $0x3a8] sm:$0xff]
    %v2456 = vld [vmem:[#allocation11 + $0x3b0] sm:$0xff]
    %v2457 = vld [vmem:[#allocation11 + $0x3b8] sm:$0xff]
    %v2458 = vld [vmem:[#allocation11 + $0x3c0] sm:$0xff]
    %v2459 = vld [vmem:[#allocation11 + $0x3c8] sm:$0xff]
    %v2460 = vld [vmem:[#allocation11 + $0x3d0] sm:$0xff]
    %v2461 = vld [vmem:[#allocation11 + $0x3d8] sm:$0xff]
    %v2462 = vld [vmem:[#allocation11 + $0x3e0] sm:$0xff]
    %v2463 = vld [vmem:[#allocation11 + $0x3e8] sm:$0xff]
    %v2464 = vld [vmem:[#allocation11 + $0x3f0] sm:$0xff]
    %v2465 = vld [vmem:[#allocation11 + $0x3f8] sm:$0xff]
    %v2466 = vld [vmem:[#allocation13] sm:$0xf]
    %v2468 = vperm.slane %v2466, 0
    %v2469 = vperm.slane %v2466, 1
    %v2470 = vperm.slane %v2466, 2
    %v2471 = vperm.slane %v2466, 3
    %v2604 = vunpack.c.l.b16 %v2338
    %v2605 = vunpack.c.h.b16 %v2338
    %v2606 = vunpack.c.l.b16 %v2339
    %v2607 = vunpack.c.h.b16 %v2339
    %v2608 = vunpack.c.l.b16 %v2340
    %v2609 = vunpack.c.h.b16 %v2340
    %v2610 = vunpack.c.l.b16 %v2341
    %v2611 = vunpack.c.h.b16 %v2341
    %v2612 = vunpack.c.l.b16 %v2342
    %v2613 = vunpack.c.h.b16 %v2342
    %v2614 = vunpack.c.l.b16 %v2343
    %v2615 = vunpack.c.h.b16 %v2343
    %v2616 = vunpack.c.l.b16 %v2344
    %v2617 = vunpack.c.h.b16 %v2344
    %v2618 = vunpack.c.l.b16 %v2345
    %v2619 = vunpack.c.h.b16 %v2345
    %v2620 = vunpack.c.l.b16 %v2346
    %v2621 = vunpack.c.h.b16 %v2346
    %v2622 = vunpack.c.l.b16 %v2347
    %v2623 = vunpack.c.h.b16 %v2347
    %v2624 = vunpack.c.l.b16 %v2348
    %v2625 = vunpack.c.h.b16 %v2348
    %v2626 = vunpack.c.l.b16 %v2349
    %v2627 = vunpack.c.h.b16 %v2349
    %v2628 = vunpack.c.l.b16 %v2350
    %v2629 = vunpack.c.h.b16 %v2350
    %v2630 = vunpack.c.l.b16 %v2351
    %v2631 = vunpack.c.h.b16 %v2351
    %v2632 = vunpack.c.l.b16 %v2352
    %v2633 = vunpack.c.h.b16 %v2352
    %v2634 = vunpack.c.l.b16 %v2353
    %v2635 = vunpack.c.h.b16 %v2353
    %v2636 = vunpack.c.l.b16 %v2354
    %v2637 = vunpack.c.h.b16 %v2354
    %v2638 = vunpack.c.l.b16 %v2355
    %v2639 = vunpack.c.h.b16 %v2355
    %v2640 = vunpack.c.l.b16 %v2356
    %v2641 = vunpack.c.h.b16 %v2356
    %v2642 = vunpack.c.l.b16 %v2357
    %v2643 = vunpack.c.h.b16 %v2357
    %v2644 = vunpack.c.l.b16 %v2358
    %v2645 = vunpack.c.h.b16 %v2358
    %v2646 = vunpack.c.l.b16 %v2359
    %v2647 = vunpack.c.h.b16 %v2359
    %v2648 = vunpack.c.l.b16 %v2360
    %v2649 = vunpack.c.h.b16 %v2360
    %v2650 = vunpack.c.l.b16 %v2361
    %v2651 = vunpack.c.h.b16 %v2361
    %v2652 = vunpack.c.l.b16 %v2362
    %v2653 = vunpack.c.h.b16 %v2362
    %v2654 = vunpack.c.l.b16 %v2363
    %v2655 = vunpack.c.h.b16 %v2363
    %v2656 = vunpack.c.l.b16 %v2364
    %v2657 = vunpack.c.h.b16 %v2364
    %v2658 = vunpack.c.l.b16 %v2365
    %v2659 = vunpack.c.h.b16 %v2365
    %v2660 = vunpack.c.l.b16 %v2366
    %v2661 = vunpack.c.h.b16 %v2366
    %v2662 = vunpack.c.l.b16 %v2367
    %v2663 = vunpack.c.h.b16 %v2367
    %v2664 = vunpack.c.l.b16 %v2368
    %v2665 = vunpack.c.h.b16 %v2368
    %v2666 = vunpack.c.l.b16 %v2369
    %v2667 = vunpack.c.h.b16 %v2369
    %v2668 = vunpack.c.l.b16 %v2370
    %v2669 = vunpack.c.h.b16 %v2370
    %v2670 = vunpack.c.l.b16 %v2371
    %v2671 = vunpack.c.h.b16 %v2371
    %v2672 = vunpack.c.l.b16 %v2372
    %v2673 = vunpack.c.h.b16 %v2372
    %v2674 = vunpack.c.l.b16 %v2373
    %v2675 = vunpack.c.h.b16 %v2373
    %v2676 = vunpack.c.l.b16 %v2374
    %v2677 = vunpack.c.h.b16 %v2374
    %v2678 = vunpack.c.l.b16 %v2375
    %v2679 = vunpack.c.h.b16 %v2375
    %v2680 = vunpack.c.l.b16 %v2376
    %v2681 = vunpack.c.h.b16 %v2376
    %v2682 = vunpack.c.l.b16 %v2377
    %v2683 = vunpack.c.h.b16 %v2377
    %v2684 = vunpack.c.l.b16 %v2378
    %v2685 = vunpack.c.h.b16 %v2378
    %v2686 = vunpack.c.l.b16 %v2379
    %v2687 = vunpack.c.h.b16 %v2379
    %v2688 = vunpack.c.l.b16 %v2380
    %v2689 = vunpack.c.h.b16 %v2380
    %v2690 = vunpack.c.l.b16 %v2381
    %v2691 = vunpack.c.h.b16 %v2381
    %v2692 = vunpack.c.l.b16 %v2382
    %v2693 = vunpack.c.h.b16 %v2382
    %v2694 = vunpack.c.l.b16 %v2383
    %v2695 = vunpack.c.h.b16 %v2383
    %v2696 = vunpack.c.l.b16 %v2384
    %v2697 = vunpack.c.h.b16 %v2384
    %v2698 = vunpack.c.l.b16 %v2385
    %v2699 = vunpack.c.h.b16 %v2385
    %v2700 = vunpack.c.l.b16 %v2386
    %v2701 = vunpack.c.h.b16 %v2386
    %v2702 = vunpack.c.l.b16 %v2387
    %v2703 = vunpack.c.h.b16 %v2387
    %v2704 = vunpack.c.l.b16 %v2388
    %v2705 = vunpack.c.h.b16 %v2388
    %v2706 = vunpack.c.l.b16 %v2389
    %v2707 = vunpack.c.h.b16 %v2389
    %v2708 = vunpack.c.l.b16 %v2390
    %v2709 = vunpack.c.h.b16 %v2390
    %v2710 = vunpack.c.l.b16 %v2391
    %v2711 = vunpack.c.h.b16 %v2391
    %v2712 = vunpack.c.l.b16 %v2392
    %v2713 = vunpack.c.h.b16 %v2392
    %v2714 = vunpack.c.l.b16 %v2393
    %v2715 = vunpack.c.h.b16 %v2393
    %v2716 = vunpack.c.l.b16 %v2394
    %v2717 = vunpack.c.h.b16 %v2394
    %v2718 = vunpack.c.l.b16 %v2395
    %v2719 = vunpack.c.h.b16 %v2395
    %v2720 = vunpack.c.l.b16 %v2396
    %v2721 = vunpack.c.h.b16 %v2396
    %v2722 = vunpack.c.l.b16 %v2397
    %v2723 = vunpack.c.h.b16 %v2397
    %v2724 = vunpack.c.l.b16 %v2398
    %v2725 = vunpack.c.h.b16 %v2398
    %v2726 = vunpack.c.l.b16 %v2399
    %v2727 = vunpack.c.h.b16 %v2399
    %v2728 = vunpack.c.l.b16 %v2400
    %v2729 = vunpack.c.h.b16 %v2400
    %v2730 = vunpack.c.l.b16 %v2401
    %v2731 = vunpack.c.h.b16 %v2401
    %v2732 = vunpack.c.l.b16 %v2402
    %v2733 = vunpack.c.h.b16 %v2402
    %v2734 = vunpack.c.l.b16 %v2403
    %v2735 = vunpack.c.h.b16 %v2403
    %v2736 = vunpack.c.l.b16 %v2404
    %v2737 = vunpack.c.h.b16 %v2404
    %v2738 = vunpack.c.l.b16 %v2405
    %v2739 = vunpack.c.h.b16 %v2405
    %v2740 = vunpack.c.l.b16 %v2406
    %v2741 = vunpack.c.h.b16 %v2406
    %v2742 = vunpack.c.l.b16 %v2407
    %v2743 = vunpack.c.h.b16 %v2407
    %v2744 = vunpack.c.l.b16 %v2408
    %v2745 = vunpack.c.h.b16 %v2408
    %v2746 = vunpack.c.l.b16 %v2409
    %v2747 = vunpack.c.h.b16 %v2409
    %v2748 = vunpack.c.l.b16 %v2410
    %v2749 = vunpack.c.h.b16 %v2410
    %v2750 = vunpack.c.l.b16 %v2411
    %v2751 = vunpack.c.h.b16 %v2411
    %v2752 = vunpack.c.l.b16 %v2412
    %v2753 = vunpack.c.h.b16 %v2412
    %v2754 = vunpack.c.l.b16 %v2413
    %v2755 = vunpack.c.h.b16 %v2413
    %v2756 = vunpack.c.l.b16 %v2414
    %v2757 = vunpack.c.h.b16 %v2414
    %v2758 = vunpack.c.l.b16 %v2415
    %v2759 = vunpack.c.h.b16 %v2415
    %v2760 = vunpack.c.l.b16 %v2416
    %v2761 = vunpack.c.h.b16 %v2416
    %v2762 = vunpack.c.l.b16 %v2417
    %v2763 = vunpack.c.h.b16 %v2417
    %v2764 = vunpack.c.l.b16 %v2418
    %v2765 = vunpack.c.h.b16 %v2418
    %v2766 = vunpack.c.l.b16 %v2419
    %v2767 = vunpack.c.h.b16 %v2419
    %v2768 = vunpack.c.l.b16 %v2420
    %v2769 = vunpack.c.h.b16 %v2420
    %v2770 = vunpack.c.l.b16 %v2421
    %v2771 = vunpack.c.h.b16 %v2421
    %v2772 = vunpack.c.l.b16 %v2422
    %v2773 = vunpack.c.h.b16 %v2422
    %v2774 = vunpack.c.l.b16 %v2423
    %v2775 = vunpack.c.h.b16 %v2423
    %v2776 = vunpack.c.l.b16 %v2424
    %v2777 = vunpack.c.h.b16 %v2424
    %v2778 = vunpack.c.l.b16 %v2425
    %v2779 = vunpack.c.h.b16 %v2425
    %v2780 = vunpack.c.l.b16 %v2426
    %v2781 = vunpack.c.h.b16 %v2426
    %v2782 = vunpack.c.l.b16 %v2427
    %v2783 = vunpack.c.h.b16 %v2427
    %v2784 = vunpack.c.l.b16 %v2428
    %v2785 = vunpack.c.h.b16 %v2428
    %v2786 = vunpack.c.l.b16 %v2429
    %v2787 = vunpack.c.h.b16 %v2429
    %v2788 = vunpack.c.l.b16 %v2430
    %v2789 = vunpack.c.h.b16 %v2430
    %v2790 = vunpack.c.l.b16 %v2431
    %v2791 = vunpack.c.h.b16 %v2431
    %v2792 = vunpack.c.l.b16 %v2432
    %v2793 = vunpack.c.h.b16 %v2432
    %v2794 = vunpack.c.l.b16 %v2433
    %v2795 = vunpack.c.h.b16 %v2433
    %v2796 = vunpack.c.l.b16 %v2434
    %v2797 = vunpack.c.h.b16 %v2434
    %v2798 = vunpack.c.l.b16 %v2435
    %v2799 = vunpack.c.h.b16 %v2435
    %v2800 = vunpack.c.l.b16 %v2436
    %v2801 = vunpack.c.h.b16 %v2436
    %v2802 = vunpack.c.l.b16 %v2437
    %v2803 = vunpack.c.h.b16 %v2437
    %v2804 = vunpack.c.l.b16 %v2438
    %v2805 = vunpack.c.h.b16 %v2438
    %v2806 = vunpack.c.l.b16 %v2439
    %v2807 = vunpack.c.h.b16 %v2439
    %v2808 = vunpack.c.l.b16 %v2440
    %v2809 = vunpack.c.h.b16 %v2440
    %v2810 = vunpack.c.l.b16 %v2441
    %v2811 = vunpack.c.h.b16 %v2441
    %v2812 = vunpack.c.l.b16 %v2442
    %v2813 = vunpack.c.h.b16 %v2442
    %v2814 = vunpack.c.l.b16 %v2443
    %v2815 = vunpack.c.h.b16 %v2443
    %v2816 = vunpack.c.l.b16 %v2444
    %v2817 = vunpack.c.h.b16 %v2444
    %v2818 = vunpack.c.l.b16 %v2445
    %v2819 = vunpack.c.h.b16 %v2445
    %v2820 = vunpack.c.l.b16 %v2446
    %v2821 = vunpack.c.h.b16 %v2446
    %v2822 = vunpack.c.l.b16 %v2447
    %v2823 = vunpack.c.h.b16 %v2447
    %v2824 = vunpack.c.l.b16 %v2448
    %v2825 = vunpack.c.h.b16 %v2448
    %v2826 = vunpack.c.l.b16 %v2449
    %v2827 = vunpack.c.h.b16 %v2449
    %v2828 = vunpack.c.l.b16 %v2450
    %v2829 = vunpack.c.h.b16 %v2450
    %v2830 = vunpack.c.l.b16 %v2451
    %v2831 = vunpack.c.h.b16 %v2451
    %v2832 = vunpack.c.l.b16 %v2452
    %v2833 = vunpack.c.h.b16 %v2452
    %v2834 = vunpack.c.l.b16 %v2453
    %v2835 = vunpack.c.h.b16 %v2453
    %v2836 = vunpack.c.l.b16 %v2454
    %v2837 = vunpack.c.h.b16 %v2454
    %v2838 = vunpack.c.l.b16 %v2455
    %v2839 = vunpack.c.h.b16 %v2455
    %v2840 = vunpack.c.l.b16 %v2456
    %v2841 = vunpack.c.h.b16 %v2456
    %v2842 = vunpack.c.l.b16 %v2457
    %v2843 = vunpack.c.h.b16 %v2457
    %v2844 = vunpack.c.l.b16 %v2458
    %v2845 = vunpack.c.h.b16 %v2458
    %v2846 = vunpack.c.l.b16 %v2459
    %v2847 = vunpack.c.h.b16 %v2459
    %v2848 = vunpack.c.l.b16 %v2460
    %v2849 = vunpack.c.h.b16 %v2460
    %v2850 = vunpack.c.l.b16 %v2461
    %v2851 = vunpack.c.h.b16 %v2461
    %v2852 = vunpack.c.l.b16 %v2462
    %v2853 = vunpack.c.h.b16 %v2462
    %v2854 = vunpack.c.l.b16 %v2463
    %v2855 = vunpack.c.h.b16 %v2463
    %v2856 = vunpack.c.l.b16 %v2464
    %v2857 = vunpack.c.h.b16 %v2464
    %v2858 = vunpack.c.l.b16 %v2465
    %v2859 = vunpack.c.h.b16 %v2465
    %v2860 = vpack.c.b16 %v2608, %v2604
    %v2861 = vpack.c.b16 %v2609, %v2605
    %v2862 = vpack.c.b16 %v2610, %v2606
    %v2863 = vpack.c.b16 %v2611, %v2607
    %v2864 = vpack.c.b16 %v2616, %v2612
    %v2865 = vpack.c.b16 %v2617, %v2613
    %v2866 = vpack.c.b16 %v2618, %v2614
    %v2867 = vpack.c.b16 %v2619, %v2615
    %v2868 = vpack.c.b16 %v2624, %v2620
    %v2869 = vpack.c.b16 %v2625, %v2621
    %v2870 = vpack.c.b16 %v2626, %v2622
    %v2871 = vpack.c.b16 %v2627, %v2623
    %v2872 = vpack.c.b16 %v2632, %v2628
    %v2873 = vpack.c.b16 %v2633, %v2629
    %v2874 = vpack.c.b16 %v2634, %v2630
    %v2875 = vpack.c.b16 %v2635, %v2631
    %v2876 = vpack.c.b16 %v2640, %v2636
    %v2877 = vpack.c.b16 %v2641, %v2637
    %v2878 = vpack.c.b16 %v2642, %v2638
    %v2879 = vpack.c.b16 %v2643, %v2639
    %v2880 = vpack.c.b16 %v2648, %v2644
    %v2881 = vpack.c.b16 %v2649, %v2645
    %v2882 = vpack.c.b16 %v2650, %v2646
    %v2883 = vpack.c.b16 %v2651, %v2647
    %v2884 = vpack.c.b16 %v2656, %v2652
    %v2885 = vpack.c.b16 %v2657, %v2653
    %v2886 = vpack.c.b16 %v2658, %v2654
    %v2887 = vpack.c.b16 %v2659, %v2655
    %v2888 = vpack.c.b16 %v2664, %v2660
    %v2889 = vpack.c.b16 %v2665, %v2661
    %v2890 = vpack.c.b16 %v2666, %v2662
    %v2891 = vpack.c.b16 %v2667, %v2663
    %v2892 = vpack.c.b16 %v2672, %v2668
    %v2893 = vpack.c.b16 %v2673, %v2669
    %v2894 = vpack.c.b16 %v2674, %v2670
    %v2895 = vpack.c.b16 %v2675, %v2671
    %v2896 = vpack.c.b16 %v2680, %v2676
    %v2897 = vpack.c.b16 %v2681, %v2677
    %v2898 = vpack.c.b16 %v2682, %v2678
    %v2899 = vpack.c.b16 %v2683, %v2679
    %v2900 = vpack.c.b16 %v2688, %v2684
    %v2901 = vpack.c.b16 %v2689, %v2685
    %v2902 = vpack.c.b16 %v2690, %v2686
    %v2903 = vpack.c.b16 %v2691, %v2687
    %v2904 = vpack.c.b16 %v2696, %v2692
    %v2905 = vpack.c.b16 %v2697, %v2693
    %v2906 = vpack.c.b16 %v2698, %v2694
    %v2907 = vpack.c.b16 %v2699, %v2695
    %v2908 = vpack.c.b16 %v2704, %v2700
    %v2909 = vpack.c.b16 %v2705, %v2701
    %v2910 = vpack.c.b16 %v2706, %v2702
    %v2911 = vpack.c.b16 %v2707, %v2703
    %v2912 = vpack.c.b16 %v2712, %v2708
    %v2913 = vpack.c.b16 %v2713, %v2709
    %v2914 = vpack.c.b16 %v2714, %v2710
    %v2915 = vpack.c.b16 %v2715, %v2711
    %v2916 = vpack.c.b16 %v2720, %v2716
    %v2917 = vpack.c.b16 %v2721, %v2717
    %v2918 = vpack.c.b16 %v2722, %v2718
    %v2919 = vpack.c.b16 %v2723, %v2719
    %v2920 = vpack.c.b16 %v2728, %v2724
    %v2921 = vpack.c.b16 %v2729, %v2725
    %v2922 = vpack.c.b16 %v2730, %v2726
    %v2923 = vpack.c.b16 %v2731, %v2727
    %v2924 = vpack.c.b16 %v2736, %v2732
    %v2925 = vpack.c.b16 %v2737, %v2733
    %v2926 = vpack.c.b16 %v2738, %v2734
    %v2927 = vpack.c.b16 %v2739, %v2735
    %v2928 = vpack.c.b16 %v2744, %v2740
    %v2929 = vpack.c.b16 %v2745, %v2741
    %v2930 = vpack.c.b16 %v2746, %v2742
    %v2931 = vpack.c.b16 %v2747, %v2743
    %v2932 = vpack.c.b16 %v2752, %v2748
    %v2933 = vpack.c.b16 %v2753, %v2749
    %v2934 = vpack.c.b16 %v2754, %v2750
    %v2935 = vpack.c.b16 %v2755, %v2751
    %v2936 = vpack.c.b16 %v2760, %v2756
    %v2937 = vpack.c.b16 %v2761, %v2757
    %v2938 = vpack.c.b16 %v2762, %v2758
    %v2939 = vpack.c.b16 %v2763, %v2759
    %v2940 = vpack.c.b16 %v2768, %v2764
    %v2941 = vpack.c.b16 %v2769, %v2765
    %v2942 = vpack.c.b16 %v2770, %v2766
    %v2943 = vpack.c.b16 %v2771, %v2767
    %v2944 = vpack.c.b16 %v2776, %v2772
    %v2945 = vpack.c.b16 %v2777, %v2773
    %v2946 = vpack.c.b16 %v2778, %v2774
    %v2947 = vpack.c.b16 %v2779, %v2775
    %v2948 = vpack.c.b16 %v2784, %v2780
    %v2949 = vpack.c.b16 %v2785, %v2781
    %v2950 = vpack.c.b16 %v2786, %v2782
    %v2951 = vpack.c.b16 %v2787, %v2783
    %v2952 = vpack.c.b16 %v2792, %v2788
    %v2953 = vpack.c.b16 %v2793, %v2789
    %v2954 = vpack.c.b16 %v2794, %v2790
    %v2955 = vpack.c.b16 %v2795, %v2791
    %v2956 = vpack.c.b16 %v2800, %v2796
    %v2957 = vpack.c.b16 %v2801, %v2797
    %v2958 = vpack.c.b16 %v2802, %v2798
    %v2959 = vpack.c.b16 %v2803, %v2799
    %v2960 = vpack.c.b16 %v2808, %v2804
    %v2961 = vpack.c.b16 %v2809, %v2805
    %v2962 = vpack.c.b16 %v2810, %v2806
    %v2963 = vpack.c.b16 %v2811, %v2807
    %v2964 = vpack.c.b16 %v2816, %v2812
    %v2965 = vpack.c.b16 %v2817, %v2813
    %v2966 = vpack.c.b16 %v2818, %v2814
    %v2967 = vpack.c.b16 %v2819, %v2815
    %v2968 = vpack.c.b16 %v2824, %v2820
    %v2969 = vpack.c.b16 %v2825, %v2821
    %v2970 = vpack.c.b16 %v2826, %v2822
    %v2971 = vpack.c.b16 %v2827, %v2823
    %v2972 = vpack.c.b16 %v2832, %v2828
    %v2973 = vpack.c.b16 %v2833, %v2829
    %v2974 = vpack.c.b16 %v2834, %v2830
    %v2975 = vpack.c.b16 %v2835, %v2831
    %v2976 = vpack.c.b16 %v2840, %v2836
    %v2977 = vpack.c.b16 %v2841, %v2837
    %v2978 = vpack.c.b16 %v2842, %v2838
    %v2979 = vpack.c.b16 %v2843, %v2839
    %v2980 = vpack.c.b16 %v2848, %v2844
    %v2981 = vpack.c.b16 %v2849, %v2845
    %v2982 = vpack.c.b16 %v2850, %v2846
    %v2983 = vpack.c.b16 %v2851, %v2847
    %v2984 = vpack.c.b16 %v2856, %v2852
    %v2985 = vpack.c.b16 %v2857, %v2853
    %v2986 = vpack.c.b16 %v2858, %v2854
    %v2987 = vpack.c.b16 %v2859, %v2855
    %3116 = vmatpush.bf16.msra.mxu0 %v2888
    %3117 = vmatpush.bf16.msra.mxu0 %v2884
    %3118 = vmatpush.bf16.msra.mxu0 %v2880
    %3119 = vmatpush.bf16.msra.mxu0 %v2876
    %3120 = vmatpush.bf16.msra.mxu0 %v2872
    %3121 = vmatpush.bf16.msra.mxu0 %v2868
    %3122 = vmatpush.bf16.msra.mxu0 %v2864
    %3123 = vmatpush.bf16.msra.mxu0 %v2860
    %3124 = vmatmul.bf16.gmra.mxu0 %v2334
    %v3125 = vpop.f32.mrf.mxu0
    %v3126 = vadd.f32 %v2468, %v3125
    %v3127 = vpop.f32.mrf.mxu0
    %3128 = vdwg.mxu0
    %3129 = vmatpush.bf16.msra.mxu0 %v2920
    %3130 = vmatpush.bf16.msra.mxu0 %v2916
    %3131 = vmatpush.bf16.msra.mxu0 %v2912
    %3132 = vmatpush.bf16.msra.mxu0 %v2908
    %3133 = vmatpush.bf16.msra.mxu0 %v2904
    %3134 = vmatpush.bf16.msra.mxu0 %v2900
    %3135 = vmatpush.bf16.msra.mxu0 %v2896
    %3136 = vmatpush.bf16.msra.mxu0 %v2892
    %3137 = vmatmul.bf16.gmra.mxu0 %v2335
    %v3138 = vpop.f32.mrf.mxu0
    %v3139 = vadd.f32 %v3126, %v3138
    %v3140 = vpop.f32.mrf.mxu0
    %3141 = vdwg.mxu0
    %3142 = vmatpush.bf16.msra.mxu0 %v2952
    %3143 = vmatpush.bf16.msra.mxu0 %v2948
    %3144 = vmatpush.bf16.msra.mxu0 %v2944
    %3145 = vmatpush.bf16.msra.mxu0 %v2940
    %3146 = vmatpush.bf16.msra.mxu0 %v2936
    %3147 = vmatpush.bf16.msra.mxu0 %v2932
    %3148 = vmatpush.bf16.msra.mxu0 %v2928
    %3149 = vmatpush.bf16.msra.mxu0 %v2924
    %3150 = vmatmul.bf16.gmra.mxu0 %v2336
    %v3151 = vpop.f32.mrf.mxu0
    %v3152 = vadd.f32 %v3139, %v3151
    %v3153 = vpop.f32.mrf.mxu0
    %3154 = vdwg.mxu0
    %3155 = vmatpush.bf16.msra.mxu0 %v2984
    %3156 = vmatpush.bf16.msra.mxu0 %v2980
    %3157 = vmatpush.bf16.msra.mxu0 %v2976
    %3158 = vmatpush.bf16.msra.mxu0 %v2972
    %3159 = vmatpush.bf16.msra.mxu0 %v2968
    %3160 = vmatpush.bf16.msra.mxu0 %v2964
    %3161 = vmatpush.bf16.msra.mxu0 %v2960
    %3162 = vmatpush.bf16.msra.mxu0 %v2956
    %3163 = vmatmul.bf16.gmra.mxu0 %v2337
    %v3164 = vpop.f32.mrf.mxu0
    %v3165 = vadd.f32 %v3152, %v3164
    %v3166 = vpop.f32.mrf.mxu0
    %3167 = vdwg.mxu0
    %3168 = vmatpush.bf16.msra.mxu0 %v2889
    %3169 = vmatpush.bf16.msra.mxu0 %v2885
    %3170 = vmatpush.bf16.msra.mxu0 %v2881
    %3171 = vmatpush.bf16.msra.mxu0 %v2877
    %3172 = vmatpush.bf16.msra.mxu0 %v2873
    %3173 = vmatpush.bf16.msra.mxu0 %v2869
    %3174 = vmatpush.bf16.msra.mxu0 %v2865
    %3175 = vmatpush.bf16.msra.mxu0 %v2861
    %3176 = vmatmul.bf16.gmra.mxu0 %v2334
    %v3177 = vpop.f32.mrf.mxu0
    %v3178 = vadd.f32 %v2469, %v3177
    %v3179 = vpop.f32.mrf.mxu0
    %3180 = vdwg.mxu0
    %3181 = vmatpush.bf16.msra.mxu0 %v2921
    %3182 = vmatpush.bf16.msra.mxu0 %v2917
    %3183 = vmatpush.bf16.msra.mxu0 %v2913
    %3184 = vmatpush.bf16.msra.mxu0 %v2909
    %3185 = vmatpush.bf16.msra.mxu0 %v2905
    %3186 = vmatpush.bf16.msra.mxu0 %v2901
    %3187 = vmatpush.bf16.msra.mxu0 %v2897
    %3188 = vmatpush.bf16.msra.mxu0 %v2893
    %3189 = vmatmul.bf16.gmra.mxu0 %v2335
    %v3190 = vpop.f32.mrf.mxu0
    %v3191 = vadd.f32 %v3178, %v3190
    %v3192 = vpop.f32.mrf.mxu0
    %3193 = vdwg.mxu0
    %3194 = vmatpush.bf16.msra.mxu0 %v2953
    %3195 = vmatpush.bf16.msra.mxu0 %v2949
    %3196 = vmatpush.bf16.msra.mxu0 %v2945
    %3197 = vmatpush.bf16.msra.mxu0 %v2941
    %3198 = vmatpush.bf16.msra.mxu0 %v2937
    %3199 = vmatpush.bf16.msra.mxu0 %v2933
    %3200 = vmatpush.bf16.msra.mxu0 %v2929
    %3201 = vmatpush.bf16.msra.mxu0 %v2925
    %3202 = vmatmul.bf16.gmra.mxu0 %v2336
    %v3203 = vpop.f32.mrf.mxu0
    %v3204 = vadd.f32 %v3191, %v3203
    %v3205 = vpop.f32.mrf.mxu0
    %3206 = vdwg.mxu0
    %3207 = vmatpush.bf16.msra.mxu0 %v2985
    %3208 = vmatpush.bf16.msra.mxu0 %v2981
    %3209 = vmatpush.bf16.msra.mxu0 %v2977
    %3210 = vmatpush.bf16.msra.mxu0 %v2973
    %3211 = vmatpush.bf16.msra.mxu0 %v2969
    %3212 = vmatpush.bf16.msra.mxu0 %v2965
    %3213 = vmatpush.bf16.msra.mxu0 %v2961
    %3214 = vmatpush.bf16.msra.mxu0 %v2957
    %3215 = vmatmul.bf16.gmra.mxu0 %v2337
    %v3216 = vpop.f32.mrf.mxu0
    %v3217 = vadd.f32 %v3204, %v3216
    %v3218 = vpop.f32.mrf.mxu0
    %3219 = vdwg.mxu0
    %3220 = vmatpush.bf16.msra.mxu0 %v2890
    %3221 = vmatpush.bf16.msra.mxu0 %v2886
    %3222 = vmatpush.bf16.msra.mxu0 %v2882
    %3223 = vmatpush.bf16.msra.mxu0 %v2878
    %3224 = vmatpush.bf16.msra.mxu0 %v2874
    %3225 = vmatpush.bf16.msra.mxu0 %v2870
    %3226 = vmatpush.bf16.msra.mxu0 %v2866
    %3227 = vmatpush.bf16.msra.mxu0 %v2862
    %3228 = vmatmul.bf16.gmra.mxu0 %v2334
    %v3229 = vpop.f32.mrf.mxu0
    %v3230 = vadd.f32 %v2470, %v3229
    %v3231 = vpop.f32.mrf.mxu0
    %3232 = vdwg.mxu0
    %3233 = vmatpush.bf16.msra.mxu0 %v2922
    %3234 = vmatpush.bf16.msra.mxu0 %v2918
    %3235 = vmatpush.bf16.msra.mxu0 %v2914
    %3236 = vmatpush.bf16.msra.mxu0 %v2910
    %3237 = vmatpush.bf16.msra.mxu0 %v2906
    %3238 = vmatpush.bf16.msra.mxu0 %v2902
    %3239 = vmatpush.bf16.msra.mxu0 %v2898
    %3240 = vmatpush.bf16.msra.mxu0 %v2894
    %3241 = vmatmul.bf16.gmra.mxu0 %v2335
    %v3242 = vpop.f32.mrf.mxu0
    %v3243 = vadd.f32 %v3230, %v3242
    %v3244 = vpop.f32.mrf.mxu0
    %3245 = vdwg.mxu0
    %3246 = vmatpush.bf16.msra.mxu0 %v2954
    %3247 = vmatpush.bf16.msra.mxu0 %v2950
    %3248 = vmatpush.bf16.msra.mxu0 %v2946
    %3249 = vmatpush.bf16.msra.mxu0 %v2942
    %3250 = vmatpush.bf16.msra.mxu0 %v2938
    %3251 = vmatpush.bf16.msra.mxu0 %v2934
    %3252 = vmatpush.bf16.msra.mxu0 %v2930
    %3253 = vmatpush.bf16.msra.mxu0 %v2926
    %3254 = vmatmul.bf16.gmra.mxu0 %v2336
    %v3255 = vpop.f32.mrf.mxu0
    %v3256 = vadd.f32 %v3243, %v3255
    %v3257 = vpop.f32.mrf.mxu0
    %3258 = vdwg.mxu0
    %3259 = vmatpush.bf16.msra.mxu0 %v2986
    %3260 = vmatpush.bf16.msra.mxu0 %v2982
    %3261 = vmatpush.bf16.msra.mxu0 %v2978
    %3262 = vmatpush.bf16.msra.mxu0 %v2974
    %3263 = vmatpush.bf16.msra.mxu0 %v2970
    %3264 = vmatpush.bf16.msra.mxu0 %v2966
    %3265 = vmatpush.bf16.msra.mxu0 %v2962
    %3266 = vmatpush.bf16.msra.mxu0 %v2958
    %3267 = vmatmul.bf16.gmra.mxu0 %v2337
    %v3268 = vpop.f32.mrf.mxu0
    %v3269 = vadd.f32 %v3256, %v3268
    %v3270 = vpop.f32.mrf.mxu0
    %3271 = vdwg.mxu0
    %3272 = vmatpush.bf16.msra.mxu0 %v2891
    %3273 = vmatpush.bf16.msra.mxu0 %v2887
    %3274 = vmatpush.bf16.msra.mxu0 %v2883
    %3275 = vmatpush.bf16.msra.mxu0 %v2879
    %3276 = vmatpush.bf16.msra.mxu0 %v2875
    %3277 = vmatpush.bf16.msra.mxu0 %v2871
    %3278 = vmatpush.bf16.msra.mxu0 %v2867
    %3279 = vmatpush.bf16.msra.mxu0 %v2863
    %3280 = vmatmul.bf16.gmra.mxu0 %v2334
    %v3281 = vpop.f32.mrf.mxu0
    %v3282 = vadd.f32 %v2471, %v3281
    %v3283 = vpop.f32.mrf.mxu0
    %3284 = vdwg.mxu0
    %3285 = vmatpush.bf16.msra.mxu0 %v2923
    %3286 = vmatpush.bf16.msra.mxu0 %v2919
    %3287 = vmatpush.bf16.msra.mxu0 %v2915
    %3288 = vmatpush.bf16.msra.mxu0 %v2911
    %3289 = vmatpush.bf16.msra.mxu0 %v2907
    %3290 = vmatpush.bf16.msra.mxu0 %v2903
    %3291 = vmatpush.bf16.msra.mxu0 %v2899
    %3292 = vmatpush.bf16.msra.mxu0 %v2895
    %3293 = vmatmul.bf16.gmra.mxu0 %v2335
    %v3294 = vpop.f32.mrf.mxu0
    %v3295 = vadd.f32 %v3282, %v3294
    %v3296 = vpop.f32.mrf.mxu0
    %3297 = vdwg.mxu0
    %3298 = vmatpush.bf16.msra.mxu0 %v2955
    %3299 = vmatpush.bf16.msra.mxu0 %v2951
    %3300 = vmatpush.bf16.msra.mxu0 %v2947
    %3301 = vmatpush.bf16.msra.mxu0 %v2943
    %3302 = vmatpush.bf16.msra.mxu0 %v2939
    %3303 = vmatpush.bf16.msra.mxu0 %v2935
    %3304 = vmatpush.bf16.msra.mxu0 %v2931
    %3305 = vmatpush.bf16.msra.mxu0 %v2927
    %3306 = vmatmul.bf16.gmra.mxu0 %v2336
    %v3307 = vpop.f32.mrf.mxu0
    %v3308 = vadd.f32 %v3295, %v3307
    %v3309 = vpop.f32.mrf.mxu0
    %3310 = vdwg.mxu0
    %3311 = vmatpush.bf16.msra.mxu0 %v2987
    %3312 = vmatpush.bf16.msra.mxu0 %v2983
    %3313 = vmatpush.bf16.msra.mxu0 %v2979
    %3314 = vmatpush.bf16.msra.mxu0 %v2975
    %3315 = vmatpush.bf16.msra.mxu0 %v2971
    %3316 = vmatpush.bf16.msra.mxu0 %v2967
    %3317 = vmatpush.bf16.msra.mxu0 %v2963
    %3318 = vmatpush.bf16.msra.mxu0 %v2959
    %3319 = vmatmul.bf16.gmra.mxu0 %v2337
    %v3320 = vpop.f32.mrf.mxu0
    %v3321 = vadd.f32 %v3308, %v3320
    %v3322 = vpop.f32.mrf.mxu0
    %3323 = vdwg.mxu0
    %v3328 = vrot.slane %v3217, 6
    %v3329 = vrot.slane %v3269, 4
    %v3330 = vrot.slane %v3321, 2
    %v3331 = vsel %vm167, %v3165, %v3328
    %vm3332 = vcmask 1045508
    %v3333 = vsel %vm3332, %v3329, %v3330
    %vm3334 = vcmask 1043456
    %v3335 = vsel %vm3334, %v3331, %v3333
    %3337 = vst [vmem:[#allocation14] sm:$0xff] %v3335
    // Predicated region
    $region62: #{tpu_custom_call.1} parent=1 // pred_check
      _
    $region63: #{tpu_custom_call.1} parent=1 // pred_check_branch
      %3339 = sbr.rel (0) target = $region65
    $region64: #{tpu_custom_call.1} parent=1 // pred_region
      %3341 = vsyncadd [#allocation4], 0
      %s3343 = sshll.u32 [#allocation14], 4
      %s3344 = int_to_ptr.vmem [resolvable:$true] %s3343
      %s3345 = sshll.u32 %s8, 4
      %s3346 = int_to_ptr.hbm [resolvable:$true] %s3345
      %3348 = dma.vmem_to_hbm [thread:$0]  %s3344, 128, %s3346, [#allocation4]
    $region65: #{tpu_custom_call.1} parent=1 // pred_fallthru
      _
    // Predicated region
    $region66: #{tpu_custom_call.1} parent=1 // pred_check
      _
    $region67: #{tpu_custom_call.1} parent=1 // pred_check_branch
      %3350 = sbr.rel (0) target = $region69
    $region68: #{tpu_custom_call.1} parent=1 // pred_region
      %3352 = dma.done [#allocation4], 128
    $region69: #{tpu_custom_call.1} parent=1 // pred_fallthru
      _
    %3353 = vsyncpa [#allocation3], 1
    %3354 = vsyncpa [#allocation6], 1
    %3355 = vsyncpa [#allocation9], 1
    %3356 = vsyncpa [#allocation12], 1
    %3357 = vsyncpa [#allocation4], 1

</llo_original>
